<compile_context>
chip_gen: v6e
topology: v6e:2x2x1
jax: 0.10.0
libtpu: 0.0.40
codegen_flags: <defaults>
</compile_context>

<pallas_src>
import functools

import jax
import jax.numpy as jnp
from jax import lax
from jax.experimental import pallas as pl
from jax.experimental.pallas import tpu as pltpu


# ---------------------------------------------------------------------------
# Model dimensions (scaled-down Qwen1.5-style backbone; state_dim kept at 150)
# ---------------------------------------------------------------------------
STATE_DIM = 150      # module's state_dim (encoder0 has exactly 150 entries)
S_PAD = 256          # state dim zero-padded to a lane-aligned contraction dim
HIDDEN = 128         # Qwen hidden size (1024 in the real model)
INTER = 256          # SwiGLU intermediate size (2816 in the real model)
N_LAYERS = 2         # decoder layers (24 in the real model)
MID = 128            # BweHead mid dim (512 in the real model)
ACTION_DIM = 1
OUT_LANES = 8        # small output slab width (sliced to ACTION_DIM outside)
MAX_TILE_B = 512     # max batch rows per grid step (adaptive below)
MAX_ACTION = 20.0
RMS_EPS = 1e-6
LEAKY_SLOPE = 0.01

F32 = jnp.float32
BF16 = jnp.bfloat16

assert MID == HIDDEN, "small-vector packing assumes MID == HIDDEN"

# Row layout of the packed small-vector array (all rows are HIDDEN lanes wide).
ROW_SE_B = 0
ROW_FNORM = 1
ROW_HB1 = 2
ROW_HW2 = 3
ROW_HB2 = 4                       # scalar stored at lane 0
ROW_LN1 = 5                       # N_LAYERS rows
ROW_BVO = 5 + N_LAYERS            # N_LAYERS rows (pre-fused bv @ Wo)
ROW_LN2 = 5 + 2 * N_LAYERS        # N_LAYERS rows
N_VEC_ROWS = 5 + 3 * N_LAYERS
VEC_ROWS_PAD = ((N_VEC_ROWS + 7) // 8) * 8


def _round_up(n, m):
    return ((n + m - 1) // m) * m


# ---------------------------------------------------------------------------
# Math helpers (f32 elementwise; bf16 only at matmul operands)
# ---------------------------------------------------------------------------
def _leaky_relu(x):
    return jnp.where(x > 0, x, LEAKY_SLOPE * x)


def _rmsnorm(x, w):
    # x: (B, H) f32, w: (1, H) f32
    var = jnp.mean(x * x, axis=-1, keepdims=True)
    return x * lax.rsqrt(var + RMS_EPS) * w


def _bdot(a, w_bf16):
    # bf16 MXU operands (halves HBM weight traffic, native MXU path), f32 accum.
    return jnp.dot(a.astype(BF16), w_bf16, preferred_element_type=F32)


def _sigmoid_exact(x):
    # Exact sigmoid used inside the backbone layers (no compounding approx error).
    return 1.0 / (1.0 + jnp.exp(-x))


# ---------------------------------------------------------------------------
# Fused Pallas kernel: one batch tile through the entire forward pass
# ---------------------------------------------------------------------------
def bwe_kernel(
    x_ref,        # (TILE_B, S_PAD)        bf16  (per-tile; encoder0 pre-folded)
    se_w_ref,     # (S_PAD, HIDDEN)        bf16  StateEncoder weight * encoder0
    wvo_ref,      # (L, HIDDEN, HIDDEN)    bf16  pre-fused Wv @ Wo
    wgu_ref,      # (L, HIDDEN, 2*INTER)   bf16  fused [gate | up]
    wd_ref,       # (L, INTER, HIDDEN)     bf16  down projection
    hw1_ref,      # (HIDDEN, MID)          bf16  BweHead first linear
    vecs_ref,     # (VEC_ROWS_PAD, HIDDEN) f32   packed biases / norm weights
    out_ref,      # (TILE_B, OUT_LANES)    f32   col 0 is the action
    *,
    n_layers: int,
):
    vecs = vecs_ref[...]

    def row(r):                       # static slice -> (1, HIDDEN) f32
        return vecs[r:r + 1, :]

    # ---- StateEncoder (encoder0 folded into weight) + LeakyReLU ----
    h = _leaky_relu(_bdot(x_ref[...], se_w_ref[...]) + row(ROW_SE_B))   # (TB, H)

    # ---- Qwen-style decoder layers (seq_len == 1) ----
    for l in range(n_layers):
        # attention block: softmax over one key == 1 -> attn = o_proj(v);
        # Wv@Wo and bv@Wo were fused offline, so this is one matmul + add.
        hn = _rmsnorm(h, row(ROW_LN1 + l))
        h = h + _bdot(hn, wvo_ref[l]) + row(ROW_BVO + l)
        # SwiGLU MLP block with fused gate+up matmul
        hn = _rmsnorm(h, row(ROW_LN2 + l))
        gu = _bdot(hn, wgu_ref[l])                                      # (TB, 2*INTER)
        g = gu[:, :INTER]
        u = gu[:, INTER:]
        m = g * _sigmoid_exact(g) * u                                   # SiLU(g) * u
        h = h + _bdot(m, wd_ref[l])

    # ---- final RMSNorm (last_hidden_state) ----
    h = _rmsnorm(h, row(ROW_FNORM))                                     # (TB, H)

    # ---- BweHead: Linear -> LeakyReLU -> (MID -> 1) on VPU -> sigmoid * max ----
    # TODO(synk): exact StateEncoder/BweHead definitions are not in the provided
    # source; Linear+LeakyReLU and sigmoid*max_action output scaling are assumed.
    y = _leaky_relu(_bdot(h, hw1_ref[...]) + row(ROW_HB1))              # (TB, MID)
    z = jnp.sum(y * row(ROW_HW2), axis=-1, keepdims=True)               # (TB, 1)
    z = z + vecs[ROW_HB2:ROW_HB2 + 1, 0:1]
    # approx EUP reciprocal only at the final head (single application)
    a = MAX_ACTION * pl.reciprocal(1.0 + jnp.exp(-z), approx=True)      # (TB, 1)
    # small output slab (8 lanes) instead of a 128-lane broadcast: 16x less HBM write
    out_ref[...] = jnp.broadcast_to(a, out_ref.shape)


# ---------------------------------------------------------------------------
# Parameter construction (deterministic, synthetic; offline fusions in f32)
# ---------------------------------------------------------------------------
def make_encoder0():
    pieces = [
        jnp.full((10,), 1e-6),
        jnp.full((5,), 0.1),
        jnp.full((5,), 0.01),
        jnp.full((5,), 1e-4),
        jnp.full((5,), 1e-5),
        jnp.full((10,), 0.1),
        jnp.full((20,), 0.01),
        jnp.full((10,), 1.0),
        jnp.full((30,), 0.1),
        jnp.full((50,), 1.0),
    ]
    enc0 = jnp.concatenate(pieces).astype(F32)
    assert enc0.shape == (STATE_DIM,)
    return enc0


def make_params(key):
    def dense(k, shape, scale=0.02):
        return (scale * jax.random.normal(k, shape)).astype(F32)

    ks = jax.random.split(key, 12)

    # --- StateEncoder: fold encoder0 into the weight (f32 fold, then bf16) ---
    enc0 = make_encoder0()                                   # (STATE_DIM,)
    se_w = dense(ks[0], (STATE_DIM, HIDDEN))
    se_w = enc0[:, None] * se_w                              # exact f32 fold
    se_w = jnp.pad(se_w, ((0, S_PAD - STATE_DIM), (0, 0)))   # zero rows (lane align)
    se_b = dense(ks[1], (HIDDEN,))

    # --- decoder layer weights ---
    ln1 = jnp.ones((N_LAYERS, HIDDEN), F32)
    wv = dense(ks[2], (N_LAYERS, HIDDEN, HIDDEN))
    bv = dense(ks[3], (N_LAYERS, HIDDEN))
    wo = dense(ks[4], (N_LAYERS, HIDDEN, HIDDEN))
    ln2 = jnp.ones((N_LAYERS, HIDDEN), F32)
    wgu = dense(ks[5], (N_LAYERS, HIDDEN, 2 * INTER))        # [gate | up]
    wd = dense(ks[6], (N_LAYERS, INTER, HIDDEN))
    fnorm = jnp.ones((HIDDEN,), F32)

    # softmax over a single key == 1  ->  pre-fuse the V/O projections (f32)
    wvo = jnp.einsum("lhd,ldk->lhk", wv, wo)                 # (L, H, H)
    bvo = jnp.einsum("lh,lhk->lk", bv, wo)                   # (L, H)

    # --- BweHead ---
    hw1 = dense(ks[7], (HIDDEN, MID))
    hb1 = dense(ks[8], (MID,))
    hw2 = dense(ks[9], (MID,))                               # transposed (out dim 1)
    hb2 = dense(ks[10], (1,))

    # --- pack the tiny f32 vectors into one array (one BlockSpec, one DMA) ---
    vecs = jnp.zeros((VEC_ROWS_PAD, HIDDEN), F32)
    vecs = vecs.at[ROW_SE_B].set(se_b)
    vecs = vecs.at[ROW_FNORM].set(fnorm)
    vecs = vecs.at[ROW_HB1].set(hb1)
    vecs = vecs.at[ROW_HW2].set(hw2)
    vecs = vecs.at[ROW_HB2, 0].set(hb2[0])
    vecs = vecs.at[ROW_LN1:ROW_LN1 + N_LAYERS].set(ln1)
    vecs = vecs.at[ROW_BVO:ROW_BVO + N_LAYERS].set(bvo)
    vecs = vecs.at[ROW_LN2:ROW_LN2 + N_LAYERS].set(ln2)

    return {
        "se_w": se_w.astype(BF16),
        "wvo": wvo.astype(BF16),
        "wgu": wgu.astype(BF16),
        "wd": wd.astype(BF16),
        "hw1": hw1.astype(BF16),
        "vecs": vecs,
    }


# ---------------------------------------------------------------------------
# Wrapper: adaptive batch-tiled pallas_call; weights resident (constant maps)
# ---------------------------------------------------------------------------
@jax.jit
def bwe_forward(x, params):
    B = x.shape[0]
    # adaptive tile: small batches -> one small tile; large batches -> 512-row
    # tiles (and therefore >= 2 grid steps, engaging both v7x TensorCores).
    tile_b = min(MAX_TILE_B, _round_up(B, 16))   # 16-row multiple (bf16 sublanes)
    n_tiles = pl.cdiv(B, tile_b)
    B_pad = n_tiles * tile_b
    # zero-pad batch rows and state columns; cast to bf16 (MXU operand dtype)
    xp = jnp.pad(x.astype(F32), ((0, B_pad - B), (0, S_PAD - STATE_DIM))).astype(BF16)

    def c2(i):
        return (0, 0)

    def c3(i):
        return (0, 0, 0)

    in_specs = [
        pl.BlockSpec((tile_b, S_PAD), lambda i: (i, 0)),          # x tile (streams)
        pl.BlockSpec((S_PAD, HIDDEN), c2),                        # se_w (enc0 folded)
        pl.BlockSpec((N_LAYERS, HIDDEN, HIDDEN), c3),             # wvo
        pl.BlockSpec((N_LAYERS, HIDDEN, 2 * INTER), c3),          # wgu
        pl.BlockSpec((N_LAYERS, INTER, HIDDEN), c3),              # wd
        pl.BlockSpec((HIDDEN, MID), c2),                          # hw1
        pl.BlockSpec((VEC_ROWS_PAD, HIDDEN), c2),                 # packed vectors
    ]
    out_spec = pl.BlockSpec((tile_b, OUT_LANES), lambda i: (i, 0))

    out = pl.pallas_call(
        functools.partial(bwe_kernel, n_layers=N_LAYERS),
        out_shape=jax.ShapeDtypeStruct((B_pad, OUT_LANES), F32),
        grid=(n_tiles,),
        in_specs=in_specs,
        out_specs=out_spec,
        compiler_params=pltpu.CompilerParams(
            dimension_semantics=("parallel",)),                   # megacore on v7x
    )(
        xp,
        params["se_w"], params["wvo"], params["wgu"], params["wd"],
        params["hw1"], params["vecs"],
    )
    return out[:B, :ACTION_DIM]


# ---------------------------------------------------------------------------
# Pure-JAX reference (same math, exact sigmoid everywhere) for a sanity check
# ---------------------------------------------------------------------------
def bwe_forward_ref(x, p):
    xp = jnp.pad(x.astype(F32), ((0, 0), (0, S_PAD - STATE_DIM))).astype(BF16)
    vecs = p["vecs"]

    def row(r):
        return vecs[r:r + 1, :]

    h = _leaky_relu(_bdot(xp, p["se_w"]) + row(ROW_SE_B))
    for l in range(N_LAYERS):
        hn = _rmsnorm(h, row(ROW_LN1 + l))
        h = h + _bdot(hn, p["wvo"][l]) + row(ROW_BVO + l)
        hn = _rmsnorm(h, row(ROW_LN2 + l))
        gu = _bdot(hn, p["wgu"][l])
        g, u = gu[:, :INTER], gu[:, INTER:]
        h = h + _bdot(g * _sigmoid_exact(g) * u, p["wd"][l])
    h = _rmsnorm(h, row(ROW_FNORM))
    y = _leaky_relu(_bdot(h, p["hw1"]) + row(ROW_HB1))
    z = jnp.sum(y * row(ROW_HW2), axis=-1, keepdims=True) + vecs[ROW_HB2, 0]
    return MAX_ACTION * _sigmoid_exact(z)


if __name__ == "__main__":
    key = jax.random.PRNGKey(0)
    k_x, k_p = jax.random.split(key)

    B = 2
    x = jax.random.normal(k_x, (B, STATE_DIM), dtype=F32)
    params = make_params(k_p)

    out = jax.block_until_ready(bwe_forward(x, params))
    assert out.shape == (B, ACTION_DIM)

    ref = bwe_forward_ref(x, params)
    # kernel uses approx EUP reciprocal only in the final sigmoid head
    assert jnp.allclose(out, ref, atol=5e-2, rtol=5e-2), (out, ref)

    print("KERNEL_OK")
</pallas_src>

<mosaic_0001>
module attributes {stable_mosaic.version = 11 : i64} {
  func.func @bwe_kernel(%arg0: i32, %arg1: memref<16x256xbf16, #tpu.memory_space<vmem>>, %arg2: memref<256x128xbf16, #tpu.memory_space<vmem>>, %arg3: memref<2x128x128xbf16, #tpu.memory_space<vmem>>, %arg4: memref<2x128x512xbf16, #tpu.memory_space<vmem>>, %arg5: memref<2x256x128xbf16, #tpu.memory_space<vmem>>, %arg6: memref<128x128xbf16, #tpu.memory_space<vmem>>, %arg7: memref<16x128xf32, #tpu.memory_space<vmem>>, %arg8: memref<16x8xf32, #tpu.memory_space<vmem>>) attributes {dimension_semantics = [#tpu.dimension_semantics<parallel>], iteration_bounds = array<i64: 1>, scalar_prefetch = 0 : i64, scratch_operands = 0 : i64, tpu.core_type = #tpu.core_type<tc>, window_params = [{transform_indices = @transform_0, window_bounds = array<i64: 16, 256>}, {pipeline_mode = #tpu.pipeline_mode<synchronous>, transform_indices = @transform_1, window_bounds = array<i64: 256, 128>}, {pipeline_mode = #tpu.pipeline_mode<synchronous>, transform_indices = @transform_2, window_bounds = array<i64: 2, 128, 128>}, {pipeline_mode = #tpu.pipeline_mode<synchronous>, transform_indices = @transform_3, window_bounds = array<i64: 2, 128, 512>}, {pipeline_mode = #tpu.pipeline_mode<synchronous>, transform_indices = @transform_4, window_bounds = array<i64: 2, 256, 128>}, {pipeline_mode = #tpu.pipeline_mode<synchronous>, transform_indices = @transform_5, window_bounds = array<i64: 128, 128>}, {pipeline_mode = #tpu.pipeline_mode<synchronous>, transform_indices = @transform_6, window_bounds = array<i64: 16, 128>}, {transform_indices = @transform_7, window_bounds = array<i64: 16, 8>}]} {
    %c0 = arith.constant 0 : index
    %c0_0 = arith.constant 0 : index
    %0 = vector.load %arg7[%c0, %c0_0] : memref<16x128xf32, #tpu.memory_space<vmem>>, vector<16x128xf32>
    %c0_1 = arith.constant 0 : index
    %c0_2 = arith.constant 0 : index
    %1 = vector.load %arg1[%c0_1, %c0_2] : memref<16x256xbf16, #tpu.memory_space<vmem>>, vector<16x256xbf16>
    %c0_3 = arith.constant 0 : index
    %c0_4 = arith.constant 0 : index
    %2 = vector.load %arg2[%c0_3, %c0_4] : memref<256x128xbf16, #tpu.memory_space<vmem>>, vector<256x128xbf16>
    %cst = arith.constant dense<0.000000e+00> : vector<16x128xf32>
    %3 = tpu.matmul %1, %2, %cst {dimension_numbers = #tpu.dot_dimension_numbers<[1], [0], [0], [1], [0, 0, 1, 1], [], []>} : vector<16x256xbf16>, vector<256x128xbf16>, vector<16x128xf32> -> vector<16x128xf32>
    %4 = vector.extract_strided_slice %0 {offsets = [0, 0], sizes = [1, 128], strides = [1, 1]} : vector<16x128xf32> to vector<1x128xf32>
    %5 = vector.broadcast %4 : vector<1x128xf32> to vector<16x128xf32>
    %6 = arith.addf %3, %5 : vector<16x128xf32>
    %cst_5 = arith.constant 0.000000e+00 : f32
    %7 = vector.broadcast %cst_5 : f32 to vector<16x128xf32>
    %8 = arith.cmpf ogt, %6, %7 : vector<16x128xf32>
    %cst_6 = arith.constant 0.00999999977 : f32
    %9 = vector.broadcast %cst_6 : f32 to vector<16x128xf32>
    %10 = arith.mulf %9, %6 : vector<16x128xf32>
    %11 = arith.select %8, %6, %10 : vector<16x128xi1>, vector<16x128xf32>
    %12 = vector.extract_strided_slice %0 {offsets = [5, 0], sizes = [1, 128], strides = [1, 1]} : vector<16x128xf32> to vector<1x128xf32>
    %13 = arith.mulf %11, %11 : vector<16x128xf32>
    %cst_7 = arith.constant dense<0.000000e+00> : vector<16xf32>
    %14 = vector.multi_reduction <add>, %13, %cst_7 [1] : vector<16x128xf32> to vector<16xf32>
    %15 = vector.shape_cast %14 : vector<16xf32> to vector<16x1xf32>
    %cst_8 = arith.constant 1.280000e+02 : f32
    %16 = vector.broadcast %cst_8 : f32 to vector<16x1xf32>
    %17 = arith.divf %15, %16 : vector<16x1xf32>
    %cst_9 = arith.constant 9.99999997E-7 : f32
    %18 = vector.broadcast %cst_9 : f32 to vector<16x1xf32>
    %19 = arith.addf %17, %18 : vector<16x1xf32>
    %20 = math.rsqrt %19 : vector<16x1xf32>
    %21 = vector.broadcast %20 : vector<16x1xf32> to vector<16x128xf32>
    %22 = arith.mulf %11, %21 : vector<16x128xf32>
    %23 = vector.broadcast %12 : vector<1x128xf32> to vector<16x128xf32>
    %24 = arith.mulf %22, %23 : vector<16x128xf32>
    %c0_10 = arith.constant 0 : index
    %c0_11 = arith.constant 0 : index
    %c0_12 = arith.constant 0 : index
    %25 = vector.load %arg3[%c0_10, %c0_11, %c0_12] : memref<2x128x128xbf16, #tpu.memory_space<vmem>>, vector<1x128x128xbf16>
    %26 = vector.shape_cast %25 : vector<1x128x128xbf16> to vector<128x128xbf16>
    %27 = arith.truncf %24 : vector<16x128xf32> to vector<16x128xbf16>
    %cst_13 = arith.constant dense<0.000000e+00> : vector<16x128xf32>
    %28 = tpu.matmul %27, %26, %cst_13 {dimension_numbers = #tpu.dot_dimension_numbers<[1], [0], [0], [1], [0, 0, 1, 1], [], []>} : vector<16x128xbf16>, vector<128x128xbf16>, vector<16x128xf32> -> vector<16x128xf32>
    %29 = arith.addf %11, %28 : vector<16x128xf32>
    %30 = vector.extract_strided_slice %0 {offsets = [7, 0], sizes = [1, 128], strides = [1, 1]} : vector<16x128xf32> to vector<1x128xf32>
    %31 = vector.broadcast %30 : vector<1x128xf32> to vector<16x128xf32>
    %32 = arith.addf %29, %31 : vector<16x128xf32>
    %33 = vector.extract_strided_slice %0 {offsets = [9, 0], sizes = [1, 128], strides = [1, 1]} : vector<16x128xf32> to vector<1x128xf32>
    %34 = arith.mulf %32, %32 : vector<16x128xf32>
    %cst_14 = arith.constant dense<0.000000e+00> : vector<16xf32>
    %35 = vector.multi_reduction <add>, %34, %cst_14 [1] : vector<16x128xf32> to vector<16xf32>
    %36 = vector.shape_cast %35 : vector<16xf32> to vector<16x1xf32>
    %cst_15 = arith.constant 1.280000e+02 : f32
    %37 = vector.broadcast %cst_15 : f32 to vector<16x1xf32>
    %38 = arith.divf %36, %37 : vector<16x1xf32>
    %cst_16 = arith.constant 9.99999997E-7 : f32
    %39 = vector.broadcast %cst_16 : f32 to vector<16x1xf32>
    %40 = arith.addf %38, %39 : vector<16x1xf32>
    %41 = math.rsqrt %40 : vector<16x1xf32>
    %42 = vector.broadcast %41 : vector<16x1xf32> to vector<16x128xf32>
    %43 = arith.mulf %32, %42 : vector<16x128xf32>
    %44 = vector.broadcast %33 : vector<1x128xf32> to vector<16x128xf32>
    %45 = arith.mulf %43, %44 : vector<16x128xf32>
    %c0_17 = arith.constant 0 : index
    %c0_18 = arith.constant 0 : index
    %c0_19 = arith.constant 0 : index
    %46 = vector.load %arg4[%c0_17, %c0_18, %c0_19] : memref<2x128x512xbf16, #tpu.memory_space<vmem>>, vector<1x128x512xbf16>
    %47 = vector.shape_cast %46 : vector<1x128x512xbf16> to vector<128x512xbf16>
    %48 = arith.truncf %45 : vector<16x128xf32> to vector<16x128xbf16>
    %cst_20 = arith.constant dense<0.000000e+00> : vector<16x512xf32>
    %49 = tpu.matmul %48, %47, %cst_20 {dimension_numbers = #tpu.dot_dimension_numbers<[1], [0], [0], [1], [0, 0, 1, 1], [], []>} : vector<16x128xbf16>, vector<128x512xbf16>, vector<16x512xf32> -> vector<16x512xf32>
    %50 = vector.extract_strided_slice %49 {offsets = [0, 0], sizes = [16, 256], strides = [1, 1]} : vector<16x512xf32> to vector<16x256xf32>
    %51 = vector.extract_strided_slice %49 {offsets = [0, 256], sizes = [16, 256], strides = [1, 1]} : vector<16x512xf32> to vector<16x256xf32>
    %cst_21 = arith.constant 0.000000e+00 : f32
    %52 = vector.broadcast %cst_21 : f32 to vector<16x256xf32>
    %53 = arith.subf %52, %50 : vector<16x256xf32>
    %54 = math.exp %53 : vector<16x256xf32>
    %cst_22 = arith.constant 1.000000e+00 : f32
    %55 = vector.broadcast %cst_22 : f32 to vector<16x256xf32>
    %56 = arith.addf %55, %54 : vector<16x256xf32>
    %cst_23 = arith.constant 1.000000e+00 : f32
    %57 = vector.broadcast %cst_23 : f32 to vector<16x256xf32>
    %58 = arith.divf %57, %56 : vector<16x256xf32>
    %59 = arith.mulf %50, %58 : vector<16x256xf32>
    %60 = arith.mulf %59, %51 : vector<16x256xf32>
    %c0_24 = arith.constant 0 : index
    %c0_25 = arith.constant 0 : index
    %c0_26 = arith.constant 0 : index
    %61 = vector.load %arg5[%c0_24, %c0_25, %c0_26] : memref<2x256x128xbf16, #tpu.memory_space<vmem>>, vector<1x256x128xbf16>
    %62 = vector.shape_cast %61 : vector<1x256x128xbf16> to vector<256x128xbf16>
    %63 = arith.truncf %60 : vector<16x256xf32> to vector<16x256xbf16>
    %cst_27 = arith.constant dense<0.000000e+00> : vector<16x128xf32>
    %64 = tpu.matmul %63, %62, %cst_27 {dimension_numbers = #tpu.dot_dimension_numbers<[1], [0], [0], [1], [0, 0, 1, 1], [], []>} : vector<16x256xbf16>, vector<256x128xbf16>, vector<16x128xf32> -> vector<16x128xf32>
    %65 = arith.addf %32, %64 : vector<16x128xf32>
    %66 = vector.extract_strided_slice %0 {offsets = [6, 0], sizes = [1, 128], strides = [1, 1]} : vector<16x128xf32> to vector<1x128xf32>
    %67 = arith.mulf %65, %65 : vector<16x128xf32>
    %cst_28 = arith.constant dense<0.000000e+00> : vector<16xf32>
    %68 = vector.multi_reduction <add>, %67, %cst_28 [1] : vector<16x128xf32> to vector<16xf32>
    %69 = vector.shape_cast %68 : vector<16xf32> to vector<16x1xf32>
    %cst_29 = arith.constant 1.280000e+02 : f32
    %70 = vector.broadcast %cst_29 : f32 to vector<16x1xf32>
    %71 = arith.divf %69, %70 : vector<16x1xf32>
    %cst_30 = arith.constant 9.99999997E-7 : f32
    %72 = vector.broadcast %cst_30 : f32 to vector<16x1xf32>
    %73 = arith.addf %71, %72 : vector<16x1xf32>
    %74 = math.rsqrt %73 : vector<16x1xf32>
    %75 = vector.broadcast %74 : vector<16x1xf32> to vector<16x128xf32>
    %76 = arith.mulf %65, %75 : vector<16x128xf32>
    %77 = vector.broadcast %66 : vector<1x128xf32> to vector<16x128xf32>
    %78 = arith.mulf %76, %77 : vector<16x128xf32>
    %c1 = arith.constant 1 : index
    %c0_31 = arith.constant 0 : index
    %c0_32 = arith.constant 0 : index
    %79 = vector.load %arg3[%c1, %c0_31, %c0_32] : memref<2x128x128xbf16, #tpu.memory_space<vmem>>, vector<1x128x128xbf16>
    %80 = vector.shape_cast %79 : vector<1x128x128xbf16> to vector<128x128xbf16>
    %81 = arith.truncf %78 : vector<16x128xf32> to vector<16x128xbf16>
    %cst_33 = arith.constant dense<0.000000e+00> : vector<16x128xf32>
    %82 = tpu.matmul %81, %80, %cst_33 {dimension_numbers = #tpu.dot_dimension_numbers<[1], [0], [0], [1], [0, 0, 1, 1], [], []>} : vector<16x128xbf16>, vector<128x128xbf16>, vector<16x128xf32> -> vector<16x128xf32>
    %83 = arith.addf %65, %82 : vector<16x128xf32>
    %84 = vector.extract_strided_slice %0 {offsets = [8, 0], sizes = [1, 128], strides = [1, 1]} : vector<16x128xf32> to vector<1x128xf32>
    %85 = vector.broadcast %84 : vector<1x128xf32> to vector<16x128xf32>
    %86 = arith.addf %83, %85 : vector<16x128xf32>
    %87 = vector.extract_strided_slice %0 {offsets = [10, 0], sizes = [1, 128], strides = [1, 1]} : vector<16x128xf32> to vector<1x128xf32>
    %88 = arith.mulf %86, %86 : vector<16x128xf32>
    %cst_34 = arith.constant dense<0.000000e+00> : vector<16xf32>
    %89 = vector.multi_reduction <add>, %88, %cst_34 [1] : vector<16x128xf32> to vector<16xf32>
    %90 = vector.shape_cast %89 : vector<16xf32> to vector<16x1xf32>
    %cst_35 = arith.constant 1.280000e+02 : f32
    %91 = vector.broadcast %cst_35 : f32 to vector<16x1xf32>
    %92 = arith.divf %90, %91 : vector<16x1xf32>
    %cst_36 = arith.constant 9.99999997E-7 : f32
    %93 = vector.broadcast %cst_36 : f32 to vector<16x1xf32>
    %94 = arith.addf %92, %93 : vector<16x1xf32>
    %95 = math.rsqrt %94 : vector<16x1xf32>
    %96 = vector.broadcast %95 : vector<16x1xf32> to vector<16x128xf32>
    %97 = arith.mulf %86, %96 : vector<16x128xf32>
    %98 = vector.broadcast %87 : vector<1x128xf32> to vector<16x128xf32>
    %99 = arith.mulf %97, %98 : vector<16x128xf32>
    %c1_37 = arith.constant 1 : index
    %c0_38 = arith.constant 0 : index
    %c0_39 = arith.constant 0 : index
    %100 = vector.load %arg4[%c1_37, %c0_38, %c0_39] : memref<2x128x512xbf16, #tpu.memory_space<vmem>>, vector<1x128x512xbf16>
    %101 = vector.shape_cast %100 : vector<1x128x512xbf16> to vector<128x512xbf16>
    %102 = arith.truncf %99 : vector<16x128xf32> to vector<16x128xbf16>
    %cst_40 = arith.constant dense<0.000000e+00> : vector<16x512xf32>
    %103 = tpu.matmul %102, %101, %cst_40 {dimension_numbers = #tpu.dot_dimension_numbers<[1], [0], [0], [1], [0, 0, 1, 1], [], []>} : vector<16x128xbf16>, vector<128x512xbf16>, vector<16x512xf32> -> vector<16x512xf32>
    %104 = vector.extract_strided_slice %103 {offsets = [0, 0], sizes = [16, 256], strides = [1, 1]} : vector<16x512xf32> to vector<16x256xf32>
    %105 = vector.extract_strided_slice %103 {offsets = [0, 256], sizes = [16, 256], strides = [1, 1]} : vector<16x512xf32> to vector<16x256xf32>
    %cst_41 = arith.constant 0.000000e+00 : f32
    %106 = vector.broadcast %cst_41 : f32 to vector<16x256xf32>
    %107 = arith.subf %106, %104 : vector<16x256xf32>
    %108 = math.exp %107 : vector<16x256xf32>
    %cst_42 = arith.constant 1.000000e+00 : f32
    %109 = vector.broadcast %cst_42 : f32 to vector<16x256xf32>
    %110 = arith.addf %109, %108 : vector<16x256xf32>
    %cst_43 = arith.constant 1.000000e+00 : f32
    %111 = vector.broadcast %cst_43 : f32 to vector<16x256xf32>
    %112 = arith.divf %111, %110 : vector<16x256xf32>
    %113 = arith.mulf %104, %112 : vector<16x256xf32>
    %114 = arith.mulf %113, %105 : vector<16x256xf32>
    %c1_44 = arith.constant 1 : index
    %c0_45 = arith.constant 0 : index
    %c0_46 = arith.constant 0 : index
    %115 = vector.load %arg5[%c1_44, %c0_45, %c0_46] : memref<2x256x128xbf16, #tpu.memory_space<vmem>>, vector<1x256x128xbf16>
    %116 = vector.shape_cast %115 : vector<1x256x128xbf16> to vector<256x128xbf16>
    %117 = arith.truncf %114 : vector<16x256xf32> to vector<16x256xbf16>
    %cst_47 = arith.constant dense<0.000000e+00> : vector<16x128xf32>
    %118 = tpu.matmul %117, %116, %cst_47 {dimension_numbers = #tpu.dot_dimension_numbers<[1], [0], [0], [1], [0, 0, 1, 1], [], []>} : vector<16x256xbf16>, vector<256x128xbf16>, vector<16x128xf32> -> vector<16x128xf32>
    %119 = arith.addf %86, %118 : vector<16x128xf32>
    %120 = vector.extract_strided_slice %0 {offsets = [1, 0], sizes = [1, 128], strides = [1, 1]} : vector<16x128xf32> to vector<1x128xf32>
    %121 = arith.mulf %119, %119 : vector<16x128xf32>
    %cst_48 = arith.constant dense<0.000000e+00> : vector<16xf32>
    %122 = vector.multi_reduction <add>, %121, %cst_48 [1] : vector<16x128xf32> to vector<16xf32>
    %123 = vector.shape_cast %122 : vector<16xf32> to vector<16x1xf32>
    %cst_49 = arith.constant 1.280000e+02 : f32
    %124 = vector.broadcast %cst_49 : f32 to vector<16x1xf32>
    %125 = arith.divf %123, %124 : vector<16x1xf32>
    %cst_50 = arith.constant 9.99999997E-7 : f32
    %126 = vector.broadcast %cst_50 : f32 to vector<16x1xf32>
    %127 = arith.addf %125, %126 : vector<16x1xf32>
    %128 = math.rsqrt %127 : vector<16x1xf32>
    %129 = vector.broadcast %128 : vector<16x1xf32> to vector<16x128xf32>
    %130 = arith.mulf %119, %129 : vector<16x128xf32>
    %131 = vector.broadcast %120 : vector<1x128xf32> to vector<16x128xf32>
    %132 = arith.mulf %130, %131 : vector<16x128xf32>
    %c0_51 = arith.constant 0 : index
    %c0_52 = arith.constant 0 : index
    %133 = vector.load %arg6[%c0_51, %c0_52] : memref<128x128xbf16, #tpu.memory_space<vmem>>, vector<128x128xbf16>
    %134 = arith.truncf %132 : vector<16x128xf32> to vector<16x128xbf16>
    %cst_53 = arith.constant dense<0.000000e+00> : vector<16x128xf32>
    %135 = tpu.matmul %134, %133, %cst_53 {dimension_numbers = #tpu.dot_dimension_numbers<[1], [0], [0], [1], [0, 0, 1, 1], [], []>} : vector<16x128xbf16>, vector<128x128xbf16>, vector<16x128xf32> -> vector<16x128xf32>
    %136 = vector.extract_strided_slice %0 {offsets = [2, 0], sizes = [1, 128], strides = [1, 1]} : vector<16x128xf32> to vector<1x128xf32>
    %137 = vector.broadcast %136 : vector<1x128xf32> to vector<16x128xf32>
    %138 = arith.addf %135, %137 : vector<16x128xf32>
    %cst_54 = arith.constant 0.000000e+00 : f32
    %139 = vector.broadcast %cst_54 : f32 to vector<16x128xf32>
    %140 = arith.cmpf ogt, %138, %139 : vector<16x128xf32>
    %cst_55 = arith.constant 0.00999999977 : f32
    %141 = vector.broadcast %cst_55 : f32 to vector<16x128xf32>
    %142 = arith.mulf %141, %138 : vector<16x128xf32>
    %143 = arith.select %140, %138, %142 : vector<16x128xi1>, vector<16x128xf32>
    %144 = vector.extract_strided_slice %0 {offsets = [3, 0], sizes = [1, 128], strides = [1, 1]} : vector<16x128xf32> to vector<1x128xf32>
    %145 = vector.broadcast %144 : vector<1x128xf32> to vector<16x128xf32>
    %146 = arith.mulf %143, %145 : vector<16x128xf32>
    %cst_56 = arith.constant dense<0.000000e+00> : vector<16xf32>
    %147 = vector.multi_reduction <add>, %146, %cst_56 [1] : vector<16x128xf32> to vector<16xf32>
    %148 = vector.shape_cast %147 : vector<16xf32> to vector<16x1xf32>
    %149 = vector.extract_strided_slice %0 {offsets = [4, 0], sizes = [1, 1], strides = [1, 1]} : vector<16x128xf32> to vector<1x1xf32>
    %150 = vector.broadcast %149 : vector<1x1xf32> to vector<16x1xf32>
    %151 = arith.addf %148, %150 : vector<16x1xf32>
    %cst_57 = arith.constant 0.000000e+00 : f32
    %152 = vector.broadcast %cst_57 : f32 to vector<16x1xf32>
    %153 = arith.subf %152, %151 : vector<16x1xf32>
    %154 = math.exp %153 : vector<16x1xf32>
    %cst_58 = arith.constant 1.000000e+00 : f32
    %155 = vector.broadcast %cst_58 : f32 to vector<16x1xf32>
    %156 = arith.addf %155, %154 : vector<16x1xf32>
    %157 = tpu.reciprocal %156 {approx = true} : vector<16x1xf32> -> vector<16x1xf32>
    %cst_59 = arith.constant 2.000000e+01 : f32
    %158 = vector.broadcast %cst_59 : f32 to vector<16x1xf32>
    %159 = arith.mulf %158, %157 : vector<16x1xf32>
    %160 = vector.shape_cast %159 : vector<16x1xf32> to vector<16x1xf32>
    %161 = vector.broadcast %160 : vector<16x1xf32> to vector<16x8xf32>
    %c0_60 = arith.constant 0 : index
    %c0_61 = arith.constant 0 : index
    %162 = vector.load %arg8[%c0_60, %c0_61] : memref<16x8xf32, #tpu.memory_space<vmem>>, vector<16x8xf32>
    tpu.vector_store %arg8[%c0_60, %c0_61], %161 {strides = array<i32>} : memref<16x8xf32, #tpu.memory_space<vmem>>, vector<16x8xf32>,
    return
  }
  func.func @transform_0(%arg0: i32) -> (i32, i32) {
    %c0_i32 = arith.constant 0 : i32
    %c0_i32_0 = arith.constant 0 : i32
    return %arg0, %c0_i32 : i32, i32
  }
  func.func @transform_1(%arg0: i32) -> (i32, i32) {
    %c0_i32 = arith.constant 0 : i32
    %c0_i32_0 = arith.constant 0 : i32
    %c0_i32_1 = arith.constant 0 : i32
    return %c0_i32, %c0_i32_0 : i32, i32
  }
  func.func @transform_2(%arg0: i32) -> (i32, i32, i32) {
    %c0_i32 = arith.constant 0 : i32
    %c0_i32_0 = arith.constant 0 : i32
    %c0_i32_1 = arith.constant 0 : i32
    %c0_i32_2 = arith.constant 0 : i32
    return %c0_i32, %c0_i32_0, %c0_i32_1 : i32, i32, i32
  }
  func.func @transform_3(%arg0: i32) -> (i32, i32, i32) {
    %c0_i32 = arith.constant 0 : i32
    %c0_i32_0 = arith.constant 0 : i32
    %c0_i32_1 = arith.constant 0 : i32
    %c0_i32_2 = arith.constant 0 : i32
    return %c0_i32, %c0_i32_0, %c0_i32_1 : i32, i32, i32
  }
  func.func @transform_4(%arg0: i32) -> (i32, i32, i32) {
    %c0_i32 = arith.constant 0 : i32
    %c0_i32_0 = arith.constant 0 : i32
    %c0_i32_1 = arith.constant 0 : i32
    %c0_i32_2 = arith.constant 0 : i32
    return %c0_i32, %c0_i32_0, %c0_i32_1 : i32, i32, i32
  }
  func.func @transform_5(%arg0: i32) -> (i32, i32) {
    %c0_i32 = arith.constant 0 : i32
    %c0_i32_0 = arith.constant 0 : i32
    %c0_i32_1 = arith.constant 0 : i32
    return %c0_i32, %c0_i32_0 : i32, i32
  }
  func.func @transform_6(%arg0: i32) -> (i32, i32) {
    %c0_i32 = arith.constant 0 : i32
    %c0_i32_0 = arith.constant 0 : i32
    %c0_i32_1 = arith.constant 0 : i32
    return %c0_i32, %c0_i32_0 : i32, i32
  }
  func.func @transform_7(%arg0: i32) -> (i32, i32) {
    %c0_i32 = arith.constant 0 : i32
    %c0_i32_0 = arith.constant 0 : i32
    return %arg0, %c0_i32 : i32, i32
  }
}

</mosaic_0001>

<llo_original>
// kernel: bwe_forward.1
$region0: #{bwe_forward.1}
  #allocation0 [shape = 'u32[]', space=smem, size = 0x4, offset = 0x4, fixed_abs, tag = 'smem constant byte address 0x4 - core index']
  #allocation1 [shape = 'u32[144,128]{1,0:T(1,128)}', space=vmem, size = 0x12000, scoped, tag = 'internal scratch']
  %s0 = inlined_call_operand.vmem [shape: bf16[16,256], index: 0, kind: input, shape index: {}]
  %s1 = inlined_call_operand.hbm [shape: bf16[256,128], index: 1, kind: input, shape index: {}]
  %s2 = inlined_call_operand.hbm [shape: bf16[2,128,128], index: 2, kind: input, shape index: {}]
  %s3 = inlined_call_operand.hbm [shape: bf16[2,128,512], index: 3, kind: input, shape index: {}]
  %s4 = inlined_call_operand.hbm [shape: bf16[2,256,128], index: 4, kind: input, shape index: {}]
  %s5 = inlined_call_operand.hbm [shape: bf16[128,128], index: 5, kind: input, shape index: {}]
  %s6 = inlined_call_operand.vmem [shape: f32[16,128], index: 6, kind: input, shape index: {}]
  %s7 = inlined_call_operand.vmem [shape: f32[16,8], index: 7, kind: output, shape index: {}]
  %s8 = sld [smem:[#allocation0]]
  $region58: #{bwe_forward.1} parent=0
    _
  %s10 = ssub.s32 1, %s8
  %s11 = scalar_select 0, %s10, %s8
  $region1: #{bwe_forward.1} parent=0
    #allocation2 [shape = 'u8[65536]{0}', space=vmem, size = 0x10000, scoped, tag = 'input window, operand 1, single buffered']
    #allocation3 [shape = 's32[1]{0}', space=sflag, size = 0x4, scoped, tag = 'scoped memory for bwe_forward.1']
    #allocation4 [shape = 'u8[65536]{0}', space=vmem, size = 0x10000, scoped, tag = 'input window, operand 2, single buffered']
    #allocation5 [shape = 's32[1]{0}', space=sflag, size = 0x4, scoped, tag = 'scoped memory for bwe_forward.1']
    #allocation6 [shape = 'u8[262144]{0}', space=vmem, size = 0x40000, scoped, tag = 'input window, operand 3, single buffered']
    #allocation7 [shape = 'u8[131072]{0}', space=vmem, size = 0x20000, scoped, tag = 'input window, operand 4, single buffered']
    #allocation8 [shape = 's32[1]{0}', space=sflag, size = 0x4, scoped, tag = 'scoped memory for bwe_forward.1']
    #allocation9 [shape = 'u8[32768]{0}', space=vmem, size = 0x8000, scoped, tag = 'input window, operand 5, single buffered']
    %12 = vsyncpa [#allocation3], 0
    %13 = vsyncpa [#allocation5], 0
    %14 = vsyncpa [#allocation8], 0
    // Predicated region
    $region2: #{bwe_forward.1} parent=1 // pred_check
      _
    $region3: #{bwe_forward.1} parent=1 // pred_check_branch
      %16 = sbr.rel (0) target = $region5
    $region4: #{bwe_forward.1} parent=1 // pred_region
      _
    $region5: #{bwe_forward.1} parent=1 // pred_fallthru
      _
    // Predicated region
    $region6: #{bwe_forward.1} parent=1 // pred_check
      _
    $region7: #{bwe_forward.1} parent=1 // pred_check_branch
      %18 = sbr.rel (0) target = $region9
    $region8: #{bwe_forward.1} parent=1 // pred_region
      %s20 = ssub.s32 2048, 2048
      %21 = vsyncadd [#allocation3], %s20
      %s22 = sshll.u32 [#allocation2], 4
      %s23 = int_to_ptr.vmem [resolvable:$true] %s22
      %28 = dma.hbm_to_vmem [thread:$0]  %s1, 2048, %s23, [#allocation3], 64, 64, 4
    $region9: #{bwe_forward.1} parent=1 // pred_fallthru
      _
    // Predicated region
    $region10: #{bwe_forward.1} parent=1 // pred_check
      _
    $region11: #{bwe_forward.1} parent=1 // pred_check_branch
      %30 = sbr.rel (0) target = $region13
    $region12: #{bwe_forward.1} parent=1 // pred_region
      %s32 = ssub.s32 2048, 2048
      %33 = vsyncadd [#allocation5], %s32
      %s34 = sshll.u32 [#allocation4], 4
      %s35 = int_to_ptr.vmem [resolvable:$true] %s34
      %40 = dma.hbm_to_vmem [thread:$0]  %s2, 2048, %s35, [#allocation5], 64, 64, 4
    $region13: #{bwe_forward.1} parent=1 // pred_fallthru
      _
    // Predicated region
    $region14: #{bwe_forward.1} parent=1 // pred_check
      _
    $region15: #{bwe_forward.1} parent=1 // pred_check_branch
      %42 = sbr.rel (0) target = $region17
    $region16: #{bwe_forward.1} parent=1 // pred_region
      %s44 = ssub.s32 8192, 8192
      %45 = vsyncadd [#allocation5], %s44
      %s46 = sshll.u32 [#allocation6], 4
      %s47 = int_to_ptr.vmem [resolvable:$true] %s46
      %52 = dma.hbm_to_vmem [thread:$0]  %s3, 8192, %s47, [#allocation5], 256, 256, 16
    $region17: #{bwe_forward.1} parent=1 // pred_fallthru
      _
    // Predicated region
    $region18: #{bwe_forward.1} parent=1 // pred_check
      _
    $region19: #{bwe_forward.1} parent=1 // pred_check_branch
      %54 = sbr.rel (0) target = $region21
    $region20: #{bwe_forward.1} parent=1 // pred_region
      %s56 = ssub.s32 4096, 4096
      %57 = vsyncadd [#allocation8], %s56
      %s58 = sshll.u32 [#allocation7], 4
      %s59 = int_to_ptr.vmem [resolvable:$true] %s58
      %64 = dma.hbm_to_vmem [thread:$0]  %s4, 4096, %s59, [#allocation8], 64, 64, 4
    $region21: #{bwe_forward.1} parent=1 // pred_fallthru
      _
    // Predicated region
    $region22: #{bwe_forward.1} parent=1 // pred_check
      _
    $region23: #{bwe_forward.1} parent=1 // pred_check_branch
      %66 = sbr.rel (0) target = $region25
    $region24: #{bwe_forward.1} parent=1 // pred_region
      %s68 = ssub.s32 1024, 1024
      %69 = vsyncadd [#allocation8], %s68
      %s70 = sshll.u32 [#allocation9], 4
      %s71 = int_to_ptr.vmem [resolvable:$true] %s70
      %76 = dma.hbm_to_vmem [thread:$0]  %s5, 1024, %s71, [#allocation8], 64, 64, 4
    $region25: #{bwe_forward.1} parent=1 // pred_fallthru
      _
    // Predicated region
    $region26: #{bwe_forward.1} parent=1 // pred_check
      _
    $region27: #{bwe_forward.1} parent=1 // pred_check_branch
      %78 = sbr.rel (0) target = $region29
    $region28: #{bwe_forward.1} parent=1 // pred_region
      _
    $region29: #{bwe_forward.1} parent=1 // pred_fallthru
      _
    // Predicated region
    $region30: #{bwe_forward.1} parent=1 // pred_check
      _
    $region31: #{bwe_forward.1} parent=1 // pred_check_branch
      %80 = sbr.rel (0) target = $region33
    $region32: #{bwe_forward.1} parent=1 // pred_region
      %81 = dma.done [#allocation3], 2048
    $region33: #{bwe_forward.1} parent=1 // pred_fallthru
      _
    // Predicated region
    $region34: #{bwe_forward.1} parent=1 // pred_check
      _
    $region35: #{bwe_forward.1} parent=1 // pred_check_branch
      %83 = sbr.rel (0) target = $region37
    $region36: #{bwe_forward.1} parent=1 // pred_region
      %84 = dma.done [#allocation5], 2048
    $region37: #{bwe_forward.1} parent=1 // pred_fallthru
      _
    // Predicated region
    $region38: #{bwe_forward.1} parent=1 // pred_check
      _
    $region39: #{bwe_forward.1} parent=1 // pred_check_branch
      %86 = sbr.rel (0) target = $region41
    $region40: #{bwe_forward.1} parent=1 // pred_region
      %87 = dma.done [#allocation5], 8192
    $region41: #{bwe_forward.1} parent=1 // pred_fallthru
      _
    // Predicated region
    $region42: #{bwe_forward.1} parent=1 // pred_check
      _
    $region43: #{bwe_forward.1} parent=1 // pred_check_branch
      %89 = sbr.rel (0) target = $region45
    $region44: #{bwe_forward.1} parent=1 // pred_region
      %90 = dma.done [#allocation8], 4096
    $region45: #{bwe_forward.1} parent=1 // pred_fallthru
      _
    // Predicated region
    $region46: #{bwe_forward.1} parent=1 // pred_check
      _
    $region47: #{bwe_forward.1} parent=1 // pred_check_branch
      %92 = sbr.rel (0) target = $region49
    $region48: #{bwe_forward.1} parent=1 // pred_region
      %93 = dma.done [#allocation8], 1024
    $region49: #{bwe_forward.1} parent=1 // pred_fallthru
      _
    %v95 = vld [vmem:[%s6] sm:$0xff]
    %v96 = vld [vmem:[%s6 + $0x8] sm:$0xff]
    %v97 = vld [vmem:[%s0] sm:$0xff]
    %v98 = vld [vmem:[%s0 + $0x8] sm:$0xff]
    %v99 = vld [vmem:[#allocation2] sm:$0xf]
    %v100 = vld [vmem:[#allocation2 + $0x4] sm:$0xf]
    %v101 = vld [vmem:[#allocation2 + $0x8] sm:$0xf]
    %v102 = vld [vmem:[#allocation2 + $0xc] sm:$0xf]
    %v103 = vld [vmem:[#allocation2 + $0x10] sm:$0xf]
    %v104 = vld [vmem:[#allocation2 + $0x14] sm:$0xf]
    %v105 = vld [vmem:[#allocation2 + $0x18] sm:$0xf]
    %v106 = vld [vmem:[#allocation2 + $0x1c] sm:$0xf]
    %v107 = vld [vmem:[#allocation2 + $0x20] sm:$0xf]
    %v108 = vld [vmem:[#allocation2 + $0x24] sm:$0xf]
    %v109 = vld [vmem:[#allocation2 + $0x28] sm:$0xf]
    %v110 = vld [vmem:[#allocation2 + $0x2c] sm:$0xf]
    %v111 = vld [vmem:[#allocation2 + $0x30] sm:$0xf]
    %v112 = vld [vmem:[#allocation2 + $0x34] sm:$0xf]
    %v113 = vld [vmem:[#allocation2 + $0x38] sm:$0xf]
    %v114 = vld [vmem:[#allocation2 + $0x3c] sm:$0xf]
    %v115 = vld [vmem:[#allocation2 + $0x40] sm:$0xf]
    %v116 = vld [vmem:[#allocation2 + $0x44] sm:$0xf]
    %v117 = vld [vmem:[#allocation2 + $0x48] sm:$0xf]
    %v118 = vld [vmem:[#allocation2 + $0x4c] sm:$0xf]
    %v119 = vld [vmem:[#allocation2 + $0x50] sm:$0xf]
    %v120 = vld [vmem:[#allocation2 + $0x54] sm:$0xf]
    %v121 = vld [vmem:[#allocation2 + $0x58] sm:$0xf]
    %v122 = vld [vmem:[#allocation2 + $0x5c] sm:$0xf]
    %v123 = vld [vmem:[#allocation2 + $0x60] sm:$0xf]
    %v124 = vld [vmem:[#allocation2 + $0x64] sm:$0xf]
    %v125 = vld [vmem:[#allocation2 + $0x68] sm:$0xf]
    %v126 = vld [vmem:[#allocation2 + $0x6c] sm:$0xf]
    %v127 = vld [vmem:[#allocation2 + $0x70] sm:$0xf]
    %v128 = vld [vmem:[#allocation2 + $0x74] sm:$0xf]
    %v129 = vld [vmem:[#allocation2 + $0x78] sm:$0xf]
    %v130 = vld [vmem:[#allocation2 + $0x7c] sm:$0xf]
    %v131 = vlaneseq
    %v132 = vshrl.u32 %v131, 7
    %v133 = vsub.s32 0, %v132
    %v134 = vrot.slane %v95, %v133
    %v137 = vunpack.c.l.b16 %v97
    %v138 = vunpack.c.h.b16 %v97
    %v139 = vunpack.c.l.b16 %v98
    %v140 = vunpack.c.h.b16 %v98
    %v141 = vpack.c.b16 %v139, %v137
    %v142 = vpack.c.b16 %v140, %v138
    %v177 = vunpack.c.l.b16 %v99
    %v178 = vunpack.c.l.b16 %v100
    %v179 = vunpack.c.l.b16 %v101
    %v180 = vunpack.c.l.b16 %v102
    %v181 = vunpack.c.l.b16 %v103
    %v182 = vunpack.c.l.b16 %v104
    %v183 = vunpack.c.l.b16 %v105
    %v184 = vunpack.c.l.b16 %v106
    %v185 = vunpack.c.l.b16 %v107
    %v186 = vunpack.c.l.b16 %v108
    %v187 = vunpack.c.l.b16 %v109
    %v188 = vunpack.c.l.b16 %v110
    %v189 = vunpack.c.l.b16 %v111
    %v190 = vunpack.c.l.b16 %v112
    %v191 = vunpack.c.l.b16 %v113
    %v192 = vunpack.c.l.b16 %v114
    %v193 = vunpack.c.l.b16 %v115
    %v194 = vunpack.c.l.b16 %v116
    %v195 = vunpack.c.l.b16 %v117
    %v196 = vunpack.c.l.b16 %v118
    %v197 = vunpack.c.l.b16 %v119
    %v198 = vunpack.c.l.b16 %v120
    %v199 = vunpack.c.l.b16 %v121
    %v200 = vunpack.c.l.b16 %v122
    %v201 = vunpack.c.l.b16 %v123
    %v202 = vunpack.c.l.b16 %v124
    %v203 = vunpack.c.l.b16 %v125
    %v204 = vunpack.c.l.b16 %v126
    %v205 = vunpack.c.l.b16 %v127
    %v206 = vunpack.c.l.b16 %v128
    %v207 = vunpack.c.l.b16 %v129
    %v208 = vunpack.c.l.b16 %v130
    %v209 = vpack.c.b16 %v178, %v177
    %v210 = vpack.c.b16 %v180, %v179
    %v211 = vpack.c.b16 %v182, %v181
    %v212 = vpack.c.b16 %v184, %v183
    %v213 = vpack.c.b16 %v186, %v185
    %v214 = vpack.c.b16 %v188, %v187
    %v215 = vpack.c.b16 %v190, %v189
    %v216 = vpack.c.b16 %v192, %v191
    %v217 = vpack.c.b16 %v194, %v193
    %v218 = vpack.c.b16 %v196, %v195
    %v219 = vpack.c.b16 %v198, %v197
    %v220 = vpack.c.b16 %v200, %v199
    %v221 = vpack.c.b16 %v202, %v201
    %v222 = vpack.c.b16 %v204, %v203
    %v223 = vpack.c.b16 %v206, %v205
    %v224 = vpack.c.b16 %v208, %v207
    %241 = vmatprep.subr.bf16.mxu0 0
    %242 = vmatpush1.bf16.msra.mxu0 %v216
    %243 = vmatprep.subr.bf16.mxu0 0
    %244 = vmatpush1.bf16.msra.mxu0 %v215
    %245 = vmatprep.subr.bf16.mxu0 0
    %246 = vmatpush1.bf16.msra.mxu0 %v214
    %247 = vmatprep.subr.bf16.mxu0 0
    %248 = vmatpush1.bf16.msra.mxu0 %v213
    %249 = vmatprep.subr.bf16.mxu0 0
    %250 = vmatpush1.bf16.msra.mxu0 %v212
    %251 = vmatprep.subr.bf16.mxu0 0
    %252 = vmatpush1.bf16.msra.mxu0 %v211
    %253 = vmatprep.subr.bf16.mxu0 0
    %254 = vmatpush1.bf16.msra.mxu0 %v210
    %255 = vmatprep.subr.bf16.mxu0 0
    %256 = vmatpush1.bf16.msra.mxu0 %v209
    %257 = vmatprep.subr.bf16.mxu0 0
    %258 = vmatpush2.bf16.msra.mxu0 %v224
    %259 = vmatprep.subr.bf16.mxu0 0
    %260 = vmatpush2.bf16.msra.mxu0 %v223
    %261 = vmatprep.subr.bf16.mxu0 0
    %262 = vmatpush2.bf16.msra.mxu0 %v222
    %263 = vmatprep.subr.bf16.mxu0 0
    %264 = vmatpush2.bf16.msra.mxu0 %v221
    %265 = vmatprep.subr.bf16.mxu0 0
    %266 = vmatpush2.bf16.msra.mxu0 %v220
    %267 = vmatprep.subr.bf16.mxu0 0
    %268 = vmatpush2.bf16.msra.mxu0 %v219
    %269 = vmatprep.subr.bf16.mxu0 0
    %270 = vmatpush2.bf16.msra.mxu0 %v218
    %271 = vmatprep.subr.bf16.mxu0 0
    %272 = vmatpush2.bf16.msra.mxu0 %v217
    %273 = vmatprep.mubr.bf16.mxu0 %v142
    %274 = vmatmul.mubr.bf16.gmra.mxu0 %v141
    %v275 = vpop.f32.mrf.mxu0
    %v276 = vadd.f32 %v134, %v275
    %v277 = vpop.f32.mrf.mxu0
    %v278 = vpop.f32.mrf.mxu0
    %v279 = vadd.f32 %v134, %v278
    %v280 = vpop.f32.mrf.mxu0
    %281 = vdwg.mxu0
    %vm282 = vcmp.gt.f32.partialorder %v276, 0.0
    %vm283 = vcmp.gt.f32.partialorder %v279, 0.0
    %v284 = vmul.f32 %v276, 0.01
    %v285 = vmul.f32 %v279, 0.01
    %v286 = vsel %vm282, %v276, %v284
    %v287 = vsel %vm283, %v279, %v285
    %v288 = vmul.f32 %v286, %v286
    %v289 = vmul.f32 %v287, %v287
    %290 = vadd.xlane.f32.xlu0 %v288
    %v291 = vpop.xlane.xlu0 %290
    %292 = vadd.xlane.f32.xlu0 %v289
    %v293 = vpop.xlane.xlu0 %292
    %v294 = vrcp.pop 128.0
    %v295 = vmul.f32 %v291, %v294
    %v296 = vmul.f32 %v293, %v294
    %v297 = vadd.f32 %v295, 1e-06
    %v298 = vadd.f32 %v296, 1e-06
    %v299 = vrsqrt.pop %v297
    %v300 = vrsqrt.pop %v298
    %v301 = vmul.f32 %v286, %v299
    %v302 = vmul.f32 %v287, %v300
    %v303 = vlaneseq
    %v304 = vshrl.u32 %v303, 7
    %v305 = vsub.s32 5, %v304
    %v306 = vrot.slane %v95, %v305
    %v307 = vmul.f32 %v301, %v306
    %v308 = vmul.f32 %v302, %v306
    %v309 = vld [vmem:[#allocation4] sm:$0xf]
    %v310 = vld [vmem:[#allocation4 + $0x4] sm:$0xf]
    %v311 = vld [vmem:[#allocation4 + $0x8] sm:$0xf]
    %v312 = vld [vmem:[#allocation4 + $0xc] sm:$0xf]
    %v313 = vld [vmem:[#allocation4 + $0x10] sm:$0xf]
    %v314 = vld [vmem:[#allocation4 + $0x14] sm:$0xf]
    %v315 = vld [vmem:[#allocation4 + $0x18] sm:$0xf]
    %v316 = vld [vmem:[#allocation4 + $0x1c] sm:$0xf]
    %v317 = vld [vmem:[#allocation4 + $0x20] sm:$0xf]
    %v318 = vld [vmem:[#allocation4 + $0x24] sm:$0xf]
    %v319 = vld [vmem:[#allocation4 + $0x28] sm:$0xf]
    %v320 = vld [vmem:[#allocation4 + $0x2c] sm:$0xf]
    %v321 = vld [vmem:[#allocation4 + $0x30] sm:$0xf]
    %v322 = vld [vmem:[#allocation4 + $0x34] sm:$0xf]
    %v323 = vld [vmem:[#allocation4 + $0x38] sm:$0xf]
    %v324 = vld [vmem:[#allocation4 + $0x3c] sm:$0xf]
    %v325 = vpack.c.bf16 %v308, %v307
    %v342 = vunpack.c.l.b16 %v309
    %v343 = vunpack.c.l.b16 %v310
    %v344 = vunpack.c.l.b16 %v311
    %v345 = vunpack.c.l.b16 %v312
    %v346 = vunpack.c.l.b16 %v313
    %v347 = vunpack.c.l.b16 %v314
    %v348 = vunpack.c.l.b16 %v315
    %v349 = vunpack.c.l.b16 %v316
    %v350 = vunpack.c.l.b16 %v317
    %v351 = vunpack.c.l.b16 %v318
    %v352 = vunpack.c.l.b16 %v319
    %v353 = vunpack.c.l.b16 %v320
    %v354 = vunpack.c.l.b16 %v321
    %v355 = vunpack.c.l.b16 %v322
    %v356 = vunpack.c.l.b16 %v323
    %v357 = vunpack.c.l.b16 %v324
    %v358 = vpack.c.b16 %v343, %v342
    %v359 = vpack.c.b16 %v345, %v344
    %v360 = vpack.c.b16 %v347, %v346
    %v361 = vpack.c.b16 %v349, %v348
    %v362 = vpack.c.b16 %v351, %v350
    %v363 = vpack.c.b16 %v353, %v352
    %v364 = vpack.c.b16 %v355, %v354
    %v365 = vpack.c.b16 %v357, %v356
    %374 = vmatprep.subr.bf16.mxu0 0
    %375 = vmatpush1.bf16.msra.mxu0 %v365
    %376 = vmatprep.subr.bf16.mxu0 0
    %377 = vmatpush1.bf16.msra.mxu0 %v364
    %378 = vmatprep.subr.bf16.mxu0 0
    %379 = vmatpush1.bf16.msra.mxu0 %v363
    %380 = vmatprep.subr.bf16.mxu0 0
    %381 = vmatpush1.bf16.msra.mxu0 %v362
    %382 = vmatprep.subr.bf16.mxu0 0
    %383 = vmatpush1.bf16.msra.mxu0 %v361
    %384 = vmatprep.subr.bf16.mxu0 0
    %385 = vmatpush1.bf16.msra.mxu0 %v360
    %386 = vmatprep.subr.bf16.mxu0 0
    %387 = vmatpush1.bf16.msra.mxu0 %v359
    %388 = vmatprep.subr.bf16.mxu0 0
    %389 = vmatpush1.bf16.msra.mxu0 %v358
    %390 = vmatprep.subr.bf16.mxu0 0
    %391 = vmatpush2.bf16.msra.mxu0 0
    %392 = vmatprep.subr.bf16.mxu0 0
    %393 = vmatpush2.bf16.msra.mxu0 0
    %394 = vmatprep.subr.bf16.mxu0 0
    %395 = vmatpush2.bf16.msra.mxu0 0
    %396 = vmatprep.subr.bf16.mxu0 0
    %397 = vmatpush2.bf16.msra.mxu0 0
    %398 = vmatprep.subr.bf16.mxu0 0
    %399 = vmatpush2.bf16.msra.mxu0 0
    %400 = vmatprep.subr.bf16.mxu0 0
    %401 = vmatpush2.bf16.msra.mxu0 0
    %402 = vmatprep.subr.bf16.mxu0 0
    %403 = vmatpush2.bf16.msra.mxu0 0
    %404 = vmatprep.subr.bf16.mxu0 0
    %405 = vmatpush2.bf16.msra.mxu0 0
    %406 = vmatprep.mubr.bf16.mxu0 0
    %407 = vmatmul.mubr.bf16.gmra.mxu0 %v325
    %v408 = vpop.f32.mrf.mxu0
    %v409 = vadd.f32 0.0, %v408
    %v410 = vpop.f32.mrf.mxu0
    %v411 = vpop.f32.mrf.mxu0
    %v412 = vadd.f32 0.0, %v411
    %v413 = vpop.f32.mrf.mxu0
    %414 = vdwg.mxu0
    %v415 = vadd.f32 %v286, %v409
    %v416 = vadd.f32 %v287, %v412
    %v417 = vlaneseq
    %v418 = vshrl.u32 %v417, 7
    %v419 = vsub.s32 7, %v418
    %v420 = vrot.slane %v95, %v419
    %v421 = vadd.f32 %v415, %v420
    %v422 = vadd.f32 %v416, %v420
    %v423 = vmul.f32 %v421, %v421
    %v424 = vmul.f32 %v422, %v422
    %425 = vadd.xlane.f32.xlu0 %v423
    %v426 = vpop.xlane.xlu0 %425
    %427 = vadd.xlane.f32.xlu0 %v424
    %v428 = vpop.xlane.xlu0 %427
    %v429 = vmul.f32 %v426, %v294
    %v430 = vmul.f32 %v428, %v294
    %v431 = vadd.f32 %v429, 1e-06
    %v432 = vadd.f32 %v430, 1e-06
    %v433 = vrsqrt.pop %v431
    %v434 = vrsqrt.pop %v432
    %v435 = vmul.f32 %v421, %v433
    %v436 = vmul.f32 %v422, %v434
    %v437 = vlaneseq
    %v438 = vshrl.u32 %v437, 7
    %v439 = vsub.s32 1, %v438
    %v440 = vrot.slane %v96, %v439
    %v441 = vmul.f32 %v435, %v440
    %v442 = vmul.f32 %v436, %v440
    %v443 = vld [vmem:[#allocation6] sm:$0xff]
    %v444 = vld [vmem:[#allocation6 + $0x8] sm:$0xff]
    %v445 = vld [vmem:[#allocation6 + $0x10] sm:$0xff]
    %v446 = vld [vmem:[#allocation6 + $0x18] sm:$0xff]
    %v447 = vld [vmem:[#allocation6 + $0x20] sm:$0xff]
    %v448 = vld [vmem:[#allocation6 + $0x28] sm:$0xff]
    %v449 = vld [vmem:[#allocation6 + $0x30] sm:$0xff]
    %v450 = vld [vmem:[#allocation6 + $0x38] sm:$0xff]
    %v451 = vld [vmem:[#allocation6 + $0x40] sm:$0xff]
    %v452 = vld [vmem:[#allocation6 + $0x48] sm:$0xff]
    %v453 = vld [vmem:[#allocation6 + $0x50] sm:$0xff]
    %v454 = vld [vmem:[#allocation6 + $0x58] sm:$0xff]
    %v455 = vld [vmem:[#allocation6 + $0x60] sm:$0xff]
    %v456 = vld [vmem:[#allocation6 + $0x68] sm:$0xff]
    %v457 = vld [vmem:[#allocation6 + $0x70] sm:$0xff]
    %v458 = vld [vmem:[#allocation6 + $0x78] sm:$0xff]
    %v459 = vld [vmem:[#allocation6 + $0x80] sm:$0xff]
    %v460 = vld [vmem:[#allocation6 + $0x88] sm:$0xff]
    %v461 = vld [vmem:[#allocation6 + $0x90] sm:$0xff]
    %v462 = vld [vmem:[#allocation6 + $0x98] sm:$0xff]
    %v463 = vld [vmem:[#allocation6 + $0xa0] sm:$0xff]
    %v464 = vld [vmem:[#allocation6 + $0xa8] sm:$0xff]
    %v465 = vld [vmem:[#allocation6 + $0xb0] sm:$0xff]
    %v466 = vld [vmem:[#allocation6 + $0xb8] sm:$0xff]
    %v467 = vld [vmem:[#allocation6 + $0xc0] sm:$0xff]
    %v468 = vld [vmem:[#allocation6 + $0xc8] sm:$0xff]
    %v469 = vld [vmem:[#allocation6 + $0xd0] sm:$0xff]
    %v470 = vld [vmem:[#allocation6 + $0xd8] sm:$0xff]
    %v471 = vld [vmem:[#allocation6 + $0xe0] sm:$0xff]
    %v472 = vld [vmem:[#allocation6 + $0xe8] sm:$0xff]
    %v473 = vld [vmem:[#allocation6 + $0xf0] sm:$0xff]
    %v474 = vld [vmem:[#allocation6 + $0xf8] sm:$0xff]
    %v475 = vpack.c.bf16 %v442, %v441
    %v508 = vunpack.c.l.b16 %v443
    %v509 = vunpack.c.h.b16 %v443
    %v510 = vunpack.c.l.b16 %v444
    %v511 = vunpack.c.h.b16 %v444
    %v512 = vunpack.c.l.b16 %v445
    %v513 = vunpack.c.h.b16 %v445
    %v514 = vunpack.c.l.b16 %v446
    %v515 = vunpack.c.h.b16 %v446
    %v516 = vunpack.c.l.b16 %v447
    %v517 = vunpack.c.h.b16 %v447
    %v518 = vunpack.c.l.b16 %v448
    %v519 = vunpack.c.h.b16 %v448
    %v520 = vunpack.c.l.b16 %v449
    %v521 = vunpack.c.h.b16 %v449
    %v522 = vunpack.c.l.b16 %v450
    %v523 = vunpack.c.h.b16 %v450
    %v524 = vunpack.c.l.b16 %v451
    %v525 = vunpack.c.h.b16 %v451
    %v526 = vunpack.c.l.b16 %v452
    %v527 = vunpack.c.h.b16 %v452
    %v528 = vunpack.c.l.b16 %v453
    %v529 = vunpack.c.h.b16 %v453
    %v530 = vunpack.c.l.b16 %v454
    %v531 = vunpack.c.h.b16 %v454
    %v532 = vunpack.c.l.b16 %v455
    %v533 = vunpack.c.h.b16 %v455
    %v534 = vunpack.c.l.b16 %v456
    %v535 = vunpack.c.h.b16 %v456
    %v536 = vunpack.c.l.b16 %v457
    %v537 = vunpack.c.h.b16 %v457
    %v538 = vunpack.c.l.b16 %v458
    %v539 = vunpack.c.h.b16 %v458
    %v540 = vunpack.c.l.b16 %v459
    %v541 = vunpack.c.h.b16 %v459
    %v542 = vunpack.c.l.b16 %v460
    %v543 = vunpack.c.h.b16 %v460
    %v544 = vunpack.c.l.b16 %v461
    %v545 = vunpack.c.h.b16 %v461
    %v546 = vunpack.c.l.b16 %v462
    %v547 = vunpack.c.h.b16 %v462
    %v548 = vunpack.c.l.b16 %v463
    %v549 = vunpack.c.h.b16 %v463
    %v550 = vunpack.c.l.b16 %v464
    %v551 = vunpack.c.h.b16 %v464
    %v552 = vunpack.c.l.b16 %v465
    %v553 = vunpack.c.h.b16 %v465
    %v554 = vunpack.c.l.b16 %v466
    %v555 = vunpack.c.h.b16 %v466
    %v556 = vunpack.c.l.b16 %v467
    %v557 = vunpack.c.h.b16 %v467
    %v558 = vunpack.c.l.b16 %v468
    %v559 = vunpack.c.h.b16 %v468
    %v560 = vunpack.c.l.b16 %v469
    %v561 = vunpack.c.h.b16 %v469
    %v562 = vunpack.c.l.b16 %v470
    %v563 = vunpack.c.h.b16 %v470
    %v564 = vunpack.c.l.b16 %v471
    %v565 = vunpack.c.h.b16 %v471
    %v566 = vunpack.c.l.b16 %v472
    %v567 = vunpack.c.h.b16 %v472
    %v568 = vunpack.c.l.b16 %v473
    %v569 = vunpack.c.h.b16 %v473
    %v570 = vunpack.c.l.b16 %v474
    %v571 = vunpack.c.h.b16 %v474
    %v572 = vpack.c.b16 %v512, %v508
    %v573 = vpack.c.b16 %v513, %v509
    %v574 = vpack.c.b16 %v514, %v510
    %v575 = vpack.c.b16 %v515, %v511
    %v576 = vpack.c.b16 %v520, %v516
    %v577 = vpack.c.b16 %v521, %v517
    %v578 = vpack.c.b16 %v522, %v518
    %v579 = vpack.c.b16 %v523, %v519
    %v580 = vpack.c.b16 %v528, %v524
    %v581 = vpack.c.b16 %v529, %v525
    %v582 = vpack.c.b16 %v530, %v526
    %v583 = vpack.c.b16 %v531, %v527
    %v584 = vpack.c.b16 %v536, %v532
    %v585 = vpack.c.b16 %v537, %v533
    %v586 = vpack.c.b16 %v538, %v534
    %v587 = vpack.c.b16 %v539, %v535
    %v588 = vpack.c.b16 %v544, %v540
    %v589 = vpack.c.b16 %v545, %v541
    %v590 = vpack.c.b16 %v546, %v542
    %v591 = vpack.c.b16 %v547, %v543
    %v592 = vpack.c.b16 %v552, %v548
    %v593 = vpack.c.b16 %v553, %v549
    %v594 = vpack.c.b16 %v554, %v550
    %v595 = vpack.c.b16 %v555, %v551
    %v596 = vpack.c.b16 %v560, %v556
    %v597 = vpack.c.b16 %v561, %v557
    %v598 = vpack.c.b16 %v562, %v558
    %v599 = vpack.c.b16 %v563, %v559
    %v600 = vpack.c.b16 %v568, %v564
    %v601 = vpack.c.b16 %v569, %v565
    %v602 = vpack.c.b16 %v570, %v566
    %v603 = vpack.c.b16 %v571, %v567
    %636 = vmatprep.subr.bf16.mxu0 %v601
    %637 = vmatpush1.bf16.msra.mxu0 %v600
    %638 = vmatprep.subr.bf16.mxu0 %v597
    %639 = vmatpush1.bf16.msra.mxu0 %v596
    %640 = vmatprep.subr.bf16.mxu0 %v593
    %641 = vmatpush1.bf16.msra.mxu0 %v592
    %642 = vmatprep.subr.bf16.mxu0 %v589
    %643 = vmatpush1.bf16.msra.mxu0 %v588
    %644 = vmatprep.subr.bf16.mxu0 %v585
    %645 = vmatpush1.bf16.msra.mxu0 %v584
    %646 = vmatprep.subr.bf16.mxu0 %v581
    %647 = vmatpush1.bf16.msra.mxu0 %v580
    %648 = vmatprep.subr.bf16.mxu0 %v577
    %649 = vmatpush1.bf16.msra.mxu0 %v576
    %650 = vmatprep.subr.bf16.mxu0 %v573
    %651 = vmatpush1.bf16.msra.mxu0 %v572
    %652 = vmatprep.subr.bf16.mxu0 0
    %653 = vmatpush2.bf16.msra.mxu0 0
    %654 = vmatprep.subr.bf16.mxu0 0
    %655 = vmatpush2.bf16.msra.mxu0 0
    %656 = vmatprep.subr.bf16.mxu0 0
    %657 = vmatpush2.bf16.msra.mxu0 0
    %658 = vmatprep.subr.bf16.mxu0 0
    %659 = vmatpush2.bf16.msra.mxu0 0
    %660 = vmatprep.subr.bf16.mxu0 0
    %661 = vmatpush2.bf16.msra.mxu0 0
    %662 = vmatprep.subr.bf16.mxu0 0
    %663 = vmatpush2.bf16.msra.mxu0 0
    %664 = vmatprep.subr.bf16.mxu0 0
    %665 = vmatpush2.bf16.msra.mxu0 0
    %666 = vmatprep.subr.bf16.mxu0 0
    %667 = vmatpush2.bf16.msra.mxu0 0
    %668 = vmatprep.mubr.bf16.mxu0 0
    %669 = vmatmul.mubr.bf16.gmra.mxu0 %v475
    %v670 = vpop.f32.mrf.mxu0
    %v671 = vadd.f32 0.0, %v670
    %v672 = vpop.f32.mrf.mxu0
    %v673 = vadd.f32 0.0, %v672
    %v674 = vpop.f32.mrf.mxu0
    %v675 = vadd.f32 0.0, %v674
    %v676 = vpop.f32.mrf.mxu0
    %v677 = vadd.f32 0.0, %v676
    %678 = vdwg.mxu0
    %679 = vmatprep.subr.bf16.mxu0 %v603
    %680 = vmatpush1.bf16.msra.mxu0 %v602
    %681 = vmatprep.subr.bf16.mxu0 %v599
    %682 = vmatpush1.bf16.msra.mxu0 %v598
    %683 = vmatprep.subr.bf16.mxu0 %v595
    %684 = vmatpush1.bf16.msra.mxu0 %v594
    %685 = vmatprep.subr.bf16.mxu0 %v591
    %686 = vmatpush1.bf16.msra.mxu0 %v590
    %687 = vmatprep.subr.bf16.mxu0 %v587
    %688 = vmatpush1.bf16.msra.mxu0 %v586
    %689 = vmatprep.subr.bf16.mxu0 %v583
    %690 = vmatpush1.bf16.msra.mxu0 %v582
    %691 = vmatprep.subr.bf16.mxu0 %v579
    %692 = vmatpush1.bf16.msra.mxu0 %v578
    %693 = vmatprep.subr.bf16.mxu0 %v575
    %694 = vmatpush1.bf16.msra.mxu0 %v574
    %695 = vmatprep.subr.bf16.mxu0 0
    %696 = vmatpush2.bf16.msra.mxu0 0
    %697 = vmatprep.subr.bf16.mxu0 0
    %698 = vmatpush2.bf16.msra.mxu0 0
    %699 = vmatprep.subr.bf16.mxu0 0
    %700 = vmatpush2.bf16.msra.mxu0 0
    %701 = vmatprep.subr.bf16.mxu0 0
    %702 = vmatpush2.bf16.msra.mxu0 0
    %703 = vmatprep.subr.bf16.mxu0 0
    %704 = vmatpush2.bf16.msra.mxu0 0
    %705 = vmatprep.subr.bf16.mxu0 0
    %706 = vmatpush2.bf16.msra.mxu0 0
    %707 = vmatprep.subr.bf16.mxu0 0
    %708 = vmatpush2.bf16.msra.mxu0 0
    %709 = vmatprep.subr.bf16.mxu0 0
    %710 = vmatpush2.bf16.msra.mxu0 0
    %711 = vmatprep.mubr.bf16.mxu0 0
    %712 = vmatmul.mubr.bf16.gmra.mxu0 %v475
    %v713 = vpop.f32.mrf.mxu0
    %v714 = vadd.f32 0.0, %v713
    %v715 = vpop.f32.mrf.mxu0
    %v716 = vadd.f32 0.0, %v715
    %v717 = vpop.f32.mrf.mxu0
    %v718 = vadd.f32 0.0, %v717
    %v719 = vpop.f32.mrf.mxu0
    %v720 = vadd.f32 0.0, %v719
    %721 = vdwg.mxu0
    %v722 = vsub.f32 0.0, %v671
    %v723 = vsub.f32 0.0, %v673
    %v724 = vsub.f32 0.0, %v675
    %v725 = vsub.f32 0.0, %v677
    %v726 = vmul.f32 %v722, 1.442695
    %v727 = vpow.pop %v726
    %v728 = vmul.f32 %v723, 1.442695
    %v729 = vpow.pop %v728
    %v730 = vmul.f32 %v724, 1.442695
    %v731 = vpow.pop %v730
    %v732 = vmul.f32 %v725, 1.442695
    %v733 = vpow.pop %v732
    %v734 = vadd.f32 %v727, 1.0
    %v735 = vadd.f32 %v729, 1.0
    %v736 = vadd.f32 %v731, 1.0
    %v737 = vadd.f32 %v733, 1.0
    %v738 = vrcp.pop %v734
    %v739 = vmul.f32 1.0, %v738
    %v740 = vrcp.pop %v735
    %v741 = vmul.f32 1.0, %v740
    %v742 = vrcp.pop %v736
    %v743 = vmul.f32 1.0, %v742
    %v744 = vrcp.pop %v737
    %v745 = vmul.f32 1.0, %v744
    %v746 = vmul.f32 %v671, %v739
    %v747 = vmul.f32 %v673, %v741
    %v748 = vmul.f32 %v675, %v743
    %v749 = vmul.f32 %v677, %v745
    %v750 = vmul.f32 %v746, %v714
    %v751 = vmul.f32 %v747, %v716
    %v752 = vmul.f32 %v748, %v718
    %v753 = vmul.f32 %v749, %v720
    %v754 = vld [vmem:[#allocation7] sm:$0xf]
    %v755 = vld [vmem:[#allocation7 + $0x4] sm:$0xf]
    %v756 = vld [vmem:[#allocation7 + $0x8] sm:$0xf]
    %v757 = vld [vmem:[#allocation7 + $0xc] sm:$0xf]
    %v758 = vld [vmem:[#allocation7 + $0x10] sm:$0xf]
    %v759 = vld [vmem:[#allocation7 + $0x14] sm:$0xf]
    %v760 = vld [vmem:[#allocation7 + $0x18] sm:$0xf]
    %v761 = vld [vmem:[#allocation7 + $0x1c] sm:$0xf]
    %v762 = vld [vmem:[#allocation7 + $0x20] sm:$0xf]
    %v763 = vld [vmem:[#allocation7 + $0x24] sm:$0xf]
    %v764 = vld [vmem:[#allocation7 + $0x28] sm:$0xf]
    %v765 = vld [vmem:[#allocation7 + $0x2c] sm:$0xf]
    %v766 = vld [vmem:[#allocation7 + $0x30] sm:$0xf]
    %v767 = vld [vmem:[#allocation7 + $0x34] sm:$0xf]
    %v768 = vld [vmem:[#allocation7 + $0x38] sm:$0xf]
    %v769 = vld [vmem:[#allocation7 + $0x3c] sm:$0xf]
    %v770 = vld [vmem:[#allocation7 + $0x40] sm:$0xf]
    %v771 = vld [vmem:[#allocation7 + $0x44] sm:$0xf]
    %v772 = vld [vmem:[#allocation7 + $0x48] sm:$0xf]
    %v773 = vld [vmem:[#allocation7 + $0x4c] sm:$0xf]
    %v774 = vld [vmem:[#allocation7 + $0x50] sm:$0xf]
    %v775 = vld [vmem:[#allocation7 + $0x54] sm:$0xf]
    %v776 = vld [vmem:[#allocation7 + $0x58] sm:$0xf]
    %v777 = vld [vmem:[#allocation7 + $0x5c] sm:$0xf]
    %v778 = vld [vmem:[#allocation7 + $0x60] sm:$0xf]
    %v779 = vld [vmem:[#allocation7 + $0x64] sm:$0xf]
    %v780 = vld [vmem:[#allocation7 + $0x68] sm:$0xf]
    %v781 = vld [vmem:[#allocation7 + $0x6c] sm:$0xf]
    %v782 = vld [vmem:[#allocation7 + $0x70] sm:$0xf]
    %v783 = vld [vmem:[#allocation7 + $0x74] sm:$0xf]
    %v784 = vld [vmem:[#allocation7 + $0x78] sm:$0xf]
    %v785 = vld [vmem:[#allocation7 + $0x7c] sm:$0xf]
    %v786 = vpack.c.bf16 %v752, %v750
    %v787 = vpack.c.bf16 %v753, %v751
    %v820 = vunpack.c.l.b16 %v754
    %v821 = vunpack.c.l.b16 %v755
    %v822 = vunpack.c.l.b16 %v756
    %v823 = vunpack.c.l.b16 %v757
    %v824 = vunpack.c.l.b16 %v758
    %v825 = vunpack.c.l.b16 %v759
    %v826 = vunpack.c.l.b16 %v760
    %v827 = vunpack.c.l.b16 %v761
    %v828 = vunpack.c.l.b16 %v762
    %v829 = vunpack.c.l.b16 %v763
    %v830 = vunpack.c.l.b16 %v764
    %v831 = vunpack.c.l.b16 %v765
    %v832 = vunpack.c.l.b16 %v766
    %v833 = vunpack.c.l.b16 %v767
    %v834 = vunpack.c.l.b16 %v768
    %v835 = vunpack.c.l.b16 %v769
    %v836 = vunpack.c.l.b16 %v770
    %v837 = vunpack.c.l.b16 %v771
    %v838 = vunpack.c.l.b16 %v772
    %v839 = vunpack.c.l.b16 %v773
    %v840 = vunpack.c.l.b16 %v774
    %v841 = vunpack.c.l.b16 %v775
    %v842 = vunpack.c.l.b16 %v776
    %v843 = vunpack.c.l.b16 %v777
    %v844 = vunpack.c.l.b16 %v778
    %v845 = vunpack.c.l.b16 %v779
    %v846 = vunpack.c.l.b16 %v780
    %v847 = vunpack.c.l.b16 %v781
    %v848 = vunpack.c.l.b16 %v782
    %v849 = vunpack.c.l.b16 %v783
    %v850 = vunpack.c.l.b16 %v784
    %v851 = vunpack.c.l.b16 %v785
    %v852 = vpack.c.b16 %v821, %v820
    %v853 = vpack.c.b16 %v823, %v822
    %v854 = vpack.c.b16 %v825, %v824
    %v855 = vpack.c.b16 %v827, %v826
    %v856 = vpack.c.b16 %v829, %v828
    %v857 = vpack.c.b16 %v831, %v830
    %v858 = vpack.c.b16 %v833, %v832
    %v859 = vpack.c.b16 %v835, %v834
    %v860 = vpack.c.b16 %v837, %v836
    %v861 = vpack.c.b16 %v839, %v838
    %v862 = vpack.c.b16 %v841, %v840
    %v863 = vpack.c.b16 %v843, %v842
    %v864 = vpack.c.b16 %v845, %v844
    %v865 = vpack.c.b16 %v847, %v846
    %v866 = vpack.c.b16 %v849, %v848
    %v867 = vpack.c.b16 %v851, %v850
    %884 = vmatprep.subr.bf16.mxu0 0
    %885 = vmatpush1.bf16.msra.mxu0 %v859
    %886 = vmatprep.subr.bf16.mxu0 0
    %887 = vmatpush1.bf16.msra.mxu0 %v858
    %888 = vmatprep.subr.bf16.mxu0 0
    %889 = vmatpush1.bf16.msra.mxu0 %v857
    %890 = vmatprep.subr.bf16.mxu0 0
    %891 = vmatpush1.bf16.msra.mxu0 %v856
    %892 = vmatprep.subr.bf16.mxu0 0
    %893 = vmatpush1.bf16.msra.mxu0 %v855
    %894 = vmatprep.subr.bf16.mxu0 0
    %895 = vmatpush1.bf16.msra.mxu0 %v854
    %896 = vmatprep.subr.bf16.mxu0 0
    %897 = vmatpush1.bf16.msra.mxu0 %v853
    %898 = vmatprep.subr.bf16.mxu0 0
    %899 = vmatpush1.bf16.msra.mxu0 %v852
    %900 = vmatprep.subr.bf16.mxu0 0
    %901 = vmatpush2.bf16.msra.mxu0 %v867
    %902 = vmatprep.subr.bf16.mxu0 0
    %903 = vmatpush2.bf16.msra.mxu0 %v866
    %904 = vmatprep.subr.bf16.mxu0 0
    %905 = vmatpush2.bf16.msra.mxu0 %v865
    %906 = vmatprep.subr.bf16.mxu0 0
    %907 = vmatpush2.bf16.msra.mxu0 %v864
    %908 = vmatprep.subr.bf16.mxu0 0
    %909 = vmatpush2.bf16.msra.mxu0 %v863
    %910 = vmatprep.subr.bf16.mxu0 0
    %911 = vmatpush2.bf16.msra.mxu0 %v862
    %912 = vmatprep.subr.bf16.mxu0 0
    %913 = vmatpush2.bf16.msra.mxu0 %v861
    %914 = vmatprep.subr.bf16.mxu0 0
    %915 = vmatpush2.bf16.msra.mxu0 %v860
    %916 = vmatprep.mubr.bf16.mxu0 %v787
    %917 = vmatmul.mubr.bf16.gmra.mxu0 %v786
    %v918 = vpop.f32.mrf.mxu0
    %v919 = vadd.f32 0.0, %v918
    %v920 = vpop.f32.mrf.mxu0
    %v921 = vpop.f32.mrf.mxu0
    %v922 = vadd.f32 0.0, %v921
    %v923 = vpop.f32.mrf.mxu0
    %924 = vdwg.mxu0
    %v925 = vadd.f32 %v421, %v919
    %v926 = vadd.f32 %v422, %v922
    %v927 = vmul.f32 %v925, %v925
    %v928 = vmul.f32 %v926, %v926
    %929 = vadd.xlane.f32.xlu0 %v927
    %v930 = vpop.xlane.xlu0 %929
    %931 = vadd.xlane.f32.xlu0 %v928
    %v932 = vpop.xlane.xlu0 %931
    %v933 = vmul.f32 %v930, %v294
    %v934 = vmul.f32 %v932, %v294
    %v935 = vadd.f32 %v933, 1e-06
    %v936 = vadd.f32 %v934, 1e-06
    %v937 = vrsqrt.pop %v935
    %v938 = vrsqrt.pop %v936
    %v939 = vmul.f32 %v925, %v937
    %v940 = vmul.f32 %v926, %v938
    %v941 = vlaneseq
    %v942 = vshrl.u32 %v941, 7
    %v943 = vsub.s32 6, %v942
    %v944 = vrot.slane %v95, %v943
    %v945 = vmul.f32 %v939, %v944
    %v946 = vmul.f32 %v940, %v944
    %s947 = scalar_lea.vmem [#allocation4], 64
    %v948 = vld [vmem:[%s947] sm:$0xf]
    %v949 = vld [vmem:[%s947 + $0x4] sm:$0xf]
    %v950 = vld [vmem:[%s947 + $0x8] sm:$0xf]
    %v951 = vld [vmem:[%s947 + $0xc] sm:$0xf]
    %v952 = vld [vmem:[%s947 + $0x10] sm:$0xf]
    %v953 = vld [vmem:[%s947 + $0x14] sm:$0xf]
    %v954 = vld [vmem:[%s947 + $0x18] sm:$0xf]
    %v955 = vld [vmem:[%s947 + $0x1c] sm:$0xf]
    %v956 = vld [vmem:[%s947 + $0x20] sm:$0xf]
    %v957 = vld [vmem:[%s947 + $0x24] sm:$0xf]
    %v958 = vld [vmem:[%s947 + $0x28] sm:$0xf]
    %v959 = vld [vmem:[%s947 + $0x2c] sm:$0xf]
    %v960 = vld [vmem:[%s947 + $0x30] sm:$0xf]
    %v961 = vld [vmem:[%s947 + $0x34] sm:$0xf]
    %v962 = vld [vmem:[%s947 + $0x38] sm:$0xf]
    %v963 = vld [vmem:[%s947 + $0x3c] sm:$0xf]
    %v964 = vpack.c.bf16 %v946, %v945
    %v981 = vunpack.c.l.b16 %v948
    %v982 = vunpack.c.l.b16 %v949
    %v983 = vunpack.c.l.b16 %v950
    %v984 = vunpack.c.l.b16 %v951
    %v985 = vunpack.c.l.b16 %v952
    %v986 = vunpack.c.l.b16 %v953
    %v987 = vunpack.c.l.b16 %v954
    %v988 = vunpack.c.l.b16 %v955
    %v989 = vunpack.c.l.b16 %v956
    %v990 = vunpack.c.l.b16 %v957
    %v991 = vunpack.c.l.b16 %v958
    %v992 = vunpack.c.l.b16 %v959
    %v993 = vunpack.c.l.b16 %v960
    %v994 = vunpack.c.l.b16 %v961
    %v995 = vunpack.c.l.b16 %v962
    %v996 = vunpack.c.l.b16 %v963
    %v997 = vpack.c.b16 %v982, %v981
    %v998 = vpack.c.b16 %v984, %v983
    %v999 = vpack.c.b16 %v986, %v985
    %v1000 = vpack.c.b16 %v988, %v987
    %v1001 = vpack.c.b16 %v990, %v989
    %v1002 = vpack.c.b16 %v992, %v991
    %v1003 = vpack.c.b16 %v994, %v993
    %v1004 = vpack.c.b16 %v996, %v995
    %1013 = vmatprep.subr.bf16.mxu0 0
    %1014 = vmatpush1.bf16.msra.mxu0 %v1004
    %1015 = vmatprep.subr.bf16.mxu0 0
    %1016 = vmatpush1.bf16.msra.mxu0 %v1003
    %1017 = vmatprep.subr.bf16.mxu0 0
    %1018 = vmatpush1.bf16.msra.mxu0 %v1002
    %1019 = vmatprep.subr.bf16.mxu0 0
    %1020 = vmatpush1.bf16.msra.mxu0 %v1001
    %1021 = vmatprep.subr.bf16.mxu0 0
    %1022 = vmatpush1.bf16.msra.mxu0 %v1000
    %1023 = vmatprep.subr.bf16.mxu0 0
    %1024 = vmatpush1.bf16.msra.mxu0 %v999
    %1025 = vmatprep.subr.bf16.mxu0 0
    %1026 = vmatpush1.bf16.msra.mxu0 %v998
    %1027 = vmatprep.subr.bf16.mxu0 0
    %1028 = vmatpush1.bf16.msra.mxu0 %v997
    %1029 = vmatprep.subr.bf16.mxu0 0
    %1030 = vmatpush2.bf16.msra.mxu0 0
    %1031 = vmatprep.subr.bf16.mxu0 0
    %1032 = vmatpush2.bf16.msra.mxu0 0
    %1033 = vmatprep.subr.bf16.mxu0 0
    %1034 = vmatpush2.bf16.msra.mxu0 0
    %1035 = vmatprep.subr.bf16.mxu0 0
    %1036 = vmatpush2.bf16.msra.mxu0 0
    %1037 = vmatprep.subr.bf16.mxu0 0
    %1038 = vmatpush2.bf16.msra.mxu0 0
    %1039 = vmatprep.subr.bf16.mxu0 0
    %1040 = vmatpush2.bf16.msra.mxu0 0
    %1041 = vmatprep.subr.bf16.mxu0 0
    %1042 = vmatpush2.bf16.msra.mxu0 0
    %1043 = vmatprep.subr.bf16.mxu0 0
    %1044 = vmatpush2.bf16.msra.mxu0 0
    %1045 = vmatprep.mubr.bf16.mxu0 0
    %1046 = vmatmul.mubr.bf16.gmra.mxu0 %v964
    %v1047 = vpop.f32.mrf.mxu0
    %v1048 = vadd.f32 0.0, %v1047
    %v1049 = vpop.f32.mrf.mxu0
    %v1050 = vpop.f32.mrf.mxu0
    %v1051 = vadd.f32 0.0, %v1050
    %v1052 = vpop.f32.mrf.mxu0
    %1053 = vdwg.mxu0
    %v1054 = vadd.f32 %v925, %v1048
    %v1055 = vadd.f32 %v926, %v1051
    %v1056 = vlaneseq
    %v1057 = vshrl.u32 %v1056, 7
    %v1058 = vsub.s32 0, %v1057
    %v1059 = vrot.slane %v96, %v1058
    %v1060 = vadd.f32 %v1054, %v1059
    %v1061 = vadd.f32 %v1055, %v1059
    %v1062 = vmul.f32 %v1060, %v1060
    %v1063 = vmul.f32 %v1061, %v1061
    %1064 = vadd.xlane.f32.xlu0 %v1062
    %v1065 = vpop.xlane.xlu0 %1064
    %1066 = vadd.xlane.f32.xlu0 %v1063
    %v1067 = vpop.xlane.xlu0 %1066
    %v1068 = vmul.f32 %v1065, %v294
    %v1069 = vmul.f32 %v1067, %v294
    %v1070 = vadd.f32 %v1068, 1e-06
    %v1071 = vadd.f32 %v1069, 1e-06
    %v1072 = vrsqrt.pop %v1070
    %v1073 = vrsqrt.pop %v1071
    %v1074 = vmul.f32 %v1060, %v1072
    %v1075 = vmul.f32 %v1061, %v1073
    %v1076 = vlaneseq
    %v1077 = vshrl.u32 %v1076, 7
    %v1078 = vsub.s32 2, %v1077
    %v1079 = vrot.slane %v96, %v1078
    %v1080 = vmul.f32 %v1074, %v1079
    %v1081 = vmul.f32 %v1075, %v1079
    %s1082 = scalar_lea.vmem [#allocation6], 256
    %v1083 = vld [vmem:[%s1082] sm:$0xff]
    %v1084 = vld [vmem:[%s1082 + $0x8] sm:$0xff]
    %v1085 = vld [vmem:[%s1082 + $0x10] sm:$0xff]
    %v1086 = vld [vmem:[%s1082 + $0x18] sm:$0xff]
    %v1087 = vld [vmem:[%s1082 + $0x20] sm:$0xff]
    %v1088 = vld [vmem:[%s1082 + $0x28] sm:$0xff]
    %v1089 = vld [vmem:[%s1082 + $0x30] sm:$0xff]
    %v1090 = vld [vmem:[%s1082 + $0x38] sm:$0xff]
    %v1091 = vld [vmem:[%s1082 + $0x40] sm:$0xff]
    %v1092 = vld [vmem:[%s1082 + $0x48] sm:$0xff]
    %v1093 = vld [vmem:[%s1082 + $0x50] sm:$0xff]
    %v1094 = vld [vmem:[%s1082 + $0x58] sm:$0xff]
    %v1095 = vld [vmem:[%s1082 + $0x60] sm:$0xff]
    %v1096 = vld [vmem:[%s1082 + $0x68] sm:$0xff]
    %v1097 = vld [vmem:[%s1082 + $0x70] sm:$0xff]
    %v1098 = vld [vmem:[%s1082 + $0x78] sm:$0xff]
    %v1099 = vld [vmem:[%s1082 + $0x80] sm:$0xff]
    %v1100 = vld [vmem:[%s1082 + $0x88] sm:$0xff]
    %v1101 = vld [vmem:[%s1082 + $0x90] sm:$0xff]
    %v1102 = vld [vmem:[%s1082 + $0x98] sm:$0xff]
    %v1103 = vld [vmem:[%s1082 + $0xa0] sm:$0xff]
    %v1104 = vld [vmem:[%s1082 + $0xa8] sm:$0xff]
    %v1105 = vld [vmem:[%s1082 + $0xb0] sm:$0xff]
    %v1106 = vld [vmem:[%s1082 + $0xb8] sm:$0xff]
    %v1107 = vld [vmem:[%s1082 + $0xc0] sm:$0xff]
    %v1108 = vld [vmem:[%s1082 + $0xc8] sm:$0xff]
    %v1109 = vld [vmem:[%s1082 + $0xd0] sm:$0xff]
    %v1110 = vld [vmem:[%s1082 + $0xd8] sm:$0xff]
    %v1111 = vld [vmem:[%s1082 + $0xe0] sm:$0xff]
    %v1112 = vld [vmem:[%s1082 + $0xe8] sm:$0xff]
    %v1113 = vld [vmem:[%s1082 + $0xf0] sm:$0xff]
    %v1114 = vld [vmem:[%s1082 + $0xf8] sm:$0xff]
    %v1115 = vpack.c.bf16 %v1081, %v1080
    %v1148 = vunpack.c.l.b16 %v1083
    %v1149 = vunpack.c.h.b16 %v1083
    %v1150 = vunpack.c.l.b16 %v1084
    %v1151 = vunpack.c.h.b16 %v1084
    %v1152 = vunpack.c.l.b16 %v1085
    %v1153 = vunpack.c.h.b16 %v1085
    %v1154 = vunpack.c.l.b16 %v1086
    %v1155 = vunpack.c.h.b16 %v1086
    %v1156 = vunpack.c.l.b16 %v1087
    %v1157 = vunpack.c.h.b16 %v1087
    %v1158 = vunpack.c.l.b16 %v1088
    %v1159 = vunpack.c.h.b16 %v1088
    %v1160 = vunpack.c.l.b16 %v1089
    %v1161 = vunpack.c.h.b16 %v1089
    %v1162 = vunpack.c.l.b16 %v1090
    %v1163 = vunpack.c.h.b16 %v1090
    %v1164 = vunpack.c.l.b16 %v1091
    %v1165 = vunpack.c.h.b16 %v1091
    %v1166 = vunpack.c.l.b16 %v1092
    %v1167 = vunpack.c.h.b16 %v1092
    %v1168 = vunpack.c.l.b16 %v1093
    %v1169 = vunpack.c.h.b16 %v1093
    %v1170 = vunpack.c.l.b16 %v1094
    %v1171 = vunpack.c.h.b16 %v1094
    %v1172 = vunpack.c.l.b16 %v1095
    %v1173 = vunpack.c.h.b16 %v1095
    %v1174 = vunpack.c.l.b16 %v1096
    %v1175 = vunpack.c.h.b16 %v1096
    %v1176 = vunpack.c.l.b16 %v1097
    %v1177 = vunpack.c.h.b16 %v1097
    %v1178 = vunpack.c.l.b16 %v1098
    %v1179 = vunpack.c.h.b16 %v1098
    %v1180 = vunpack.c.l.b16 %v1099
    %v1181 = vunpack.c.h.b16 %v1099
    %v1182 = vunpack.c.l.b16 %v1100
    %v1183 = vunpack.c.h.b16 %v1100
    %v1184 = vunpack.c.l.b16 %v1101
    %v1185 = vunpack.c.h.b16 %v1101
    %v1186 = vunpack.c.l.b16 %v1102
    %v1187 = vunpack.c.h.b16 %v1102
    %v1188 = vunpack.c.l.b16 %v1103
    %v1189 = vunpack.c.h.b16 %v1103
    %v1190 = vunpack.c.l.b16 %v1104
    %v1191 = vunpack.c.h.b16 %v1104
    %v1192 = vunpack.c.l.b16 %v1105
    %v1193 = vunpack.c.h.b16 %v1105
    %v1194 = vunpack.c.l.b16 %v1106
    %v1195 = vunpack.c.h.b16 %v1106
    %v1196 = vunpack.c.l.b16 %v1107
    %v1197 = vunpack.c.h.b16 %v1107
    %v1198 = vunpack.c.l.b16 %v1108
    %v1199 = vunpack.c.h.b16 %v1108
    %v1200 = vunpack.c.l.b16 %v1109
    %v1201 = vunpack.c.h.b16 %v1109
    %v1202 = vunpack.c.l.b16 %v1110
    %v1203 = vunpack.c.h.b16 %v1110
    %v1204 = vunpack.c.l.b16 %v1111
    %v1205 = vunpack.c.h.b16 %v1111
    %v1206 = vunpack.c.l.b16 %v1112
    %v1207 = vunpack.c.h.b16 %v1112
    %v1208 = vunpack.c.l.b16 %v1113
    %v1209 = vunpack.c.h.b16 %v1113
    %v1210 = vunpack.c.l.b16 %v1114
    %v1211 = vunpack.c.h.b16 %v1114
    %v1212 = vpack.c.b16 %v1152, %v1148
    %v1213 = vpack.c.b16 %v1153, %v1149
    %v1214 = vpack.c.b16 %v1154, %v1150
    %v1215 = vpack.c.b16 %v1155, %v1151
    %v1216 = vpack.c.b16 %v1160, %v1156
    %v1217 = vpack.c.b16 %v1161, %v1157
    %v1218 = vpack.c.b16 %v1162, %v1158
    %v1219 = vpack.c.b16 %v1163, %v1159
    %v1220 = vpack.c.b16 %v1168, %v1164
    %v1221 = vpack.c.b16 %v1169, %v1165
    %v1222 = vpack.c.b16 %v1170, %v1166
    %v1223 = vpack.c.b16 %v1171, %v1167
    %v1224 = vpack.c.b16 %v1176, %v1172
    %v1225 = vpack.c.b16 %v1177, %v1173
    %v1226 = vpack.c.b16 %v1178, %v1174
    %v1227 = vpack.c.b16 %v1179, %v1175
    %v1228 = vpack.c.b16 %v1184, %v1180
    %v1229 = vpack.c.b16 %v1185, %v1181
    %v1230 = vpack.c.b16 %v1186, %v1182
    %v1231 = vpack.c.b16 %v1187, %v1183
    %v1232 = vpack.c.b16 %v1192, %v1188
    %v1233 = vpack.c.b16 %v1193, %v1189
    %v1234 = vpack.c.b16 %v1194, %v1190
    %v1235 = vpack.c.b16 %v1195, %v1191
    %v1236 = vpack.c.b16 %v1200, %v1196
    %v1237 = vpack.c.b16 %v1201, %v1197
    %v1238 = vpack.c.b16 %v1202, %v1198
    %v1239 = vpack.c.b16 %v1203, %v1199
    %v1240 = vpack.c.b16 %v1208, %v1204
    %v1241 = vpack.c.b16 %v1209, %v1205
    %v1242 = vpack.c.b16 %v1210, %v1206
    %v1243 = vpack.c.b16 %v1211, %v1207
    %1276 = vmatprep.subr.bf16.mxu0 %v1241
    %1277 = vmatpush1.bf16.msra.mxu0 %v1240
    %1278 = vmatprep.subr.bf16.mxu0 %v1237
    %1279 = vmatpush1.bf16.msra.mxu0 %v1236
    %1280 = vmatprep.subr.bf16.mxu0 %v1233
    %1281 = vmatpush1.bf16.msra.mxu0 %v1232
    %1282 = vmatprep.subr.bf16.mxu0 %v1229
    %1283 = vmatpush1.bf16.msra.mxu0 %v1228
    %1284 = vmatprep.subr.bf16.mxu0 %v1225
    %1285 = vmatpush1.bf16.msra.mxu0 %v1224
    %1286 = vmatprep.subr.bf16.mxu0 %v1221
    %1287 = vmatpush1.bf16.msra.mxu0 %v1220
    %1288 = vmatprep.subr.bf16.mxu0 %v1217
    %1289 = vmatpush1.bf16.msra.mxu0 %v1216
    %1290 = vmatprep.subr.bf16.mxu0 %v1213
    %1291 = vmatpush1.bf16.msra.mxu0 %v1212
    %1292 = vmatprep.subr.bf16.mxu0 0
    %1293 = vmatpush2.bf16.msra.mxu0 0
    %1294 = vmatprep.subr.bf16.mxu0 0
    %1295 = vmatpush2.bf16.msra.mxu0 0
    %1296 = vmatprep.subr.bf16.mxu0 0
    %1297 = vmatpush2.bf16.msra.mxu0 0
    %1298 = vmatprep.subr.bf16.mxu0 0
    %1299 = vmatpush2.bf16.msra.mxu0 0
    %1300 = vmatprep.subr.bf16.mxu0 0
    %1301 = vmatpush2.bf16.msra.mxu0 0
    %1302 = vmatprep.subr.bf16.mxu0 0
    %1303 = vmatpush2.bf16.msra.mxu0 0
    %1304 = vmatprep.subr.bf16.mxu0 0
    %1305 = vmatpush2.bf16.msra.mxu0 0
    %1306 = vmatprep.subr.bf16.mxu0 0
    %1307 = vmatpush2.bf16.msra.mxu0 0
    %1308 = vmatprep.mubr.bf16.mxu0 0
    %1309 = vmatmul.mubr.bf16.gmra.mxu0 %v1115
    %v1310 = vpop.f32.mrf.mxu0
    %v1311 = vadd.f32 0.0, %v1310
    %v1312 = vpop.f32.mrf.mxu0
    %v1313 = vadd.f32 0.0, %v1312
    %v1314 = vpop.f32.mrf.mxu0
    %v1315 = vadd.f32 0.0, %v1314
    %v1316 = vpop.f32.mrf.mxu0
    %v1317 = vadd.f32 0.0, %v1316
    %1318 = vdwg.mxu0
    %1319 = vmatprep.subr.bf16.mxu0 %v1243
    %1320 = vmatpush1.bf16.msra.mxu0 %v1242
    %1321 = vmatprep.subr.bf16.mxu0 %v1239
    %1322 = vmatpush1.bf16.msra.mxu0 %v1238
    %1323 = vmatprep.subr.bf16.mxu0 %v1235
    %1324 = vmatpush1.bf16.msra.mxu0 %v1234
    %1325 = vmatprep.subr.bf16.mxu0 %v1231
    %1326 = vmatpush1.bf16.msra.mxu0 %v1230
    %1327 = vmatprep.subr.bf16.mxu0 %v1227
    %1328 = vmatpush1.bf16.msra.mxu0 %v1226
    %1329 = vmatprep.subr.bf16.mxu0 %v1223
    %1330 = vmatpush1.bf16.msra.mxu0 %v1222
    %1331 = vmatprep.subr.bf16.mxu0 %v1219
    %1332 = vmatpush1.bf16.msra.mxu0 %v1218
    %1333 = vmatprep.subr.bf16.mxu0 %v1215
    %1334 = vmatpush1.bf16.msra.mxu0 %v1214
    %1335 = vmatprep.subr.bf16.mxu0 0
    %1336 = vmatpush2.bf16.msra.mxu0 0
    %1337 = vmatprep.subr.bf16.mxu0 0
    %1338 = vmatpush2.bf16.msra.mxu0 0
    %1339 = vmatprep.subr.bf16.mxu0 0
    %1340 = vmatpush2.bf16.msra.mxu0 0
    %1341 = vmatprep.subr.bf16.mxu0 0
    %1342 = vmatpush2.bf16.msra.mxu0 0
    %1343 = vmatprep.subr.bf16.mxu0 0
    %1344 = vmatpush2.bf16.msra.mxu0 0
    %1345 = vmatprep.subr.bf16.mxu0 0
    %1346 = vmatpush2.bf16.msra.mxu0 0
    %1347 = vmatprep.subr.bf16.mxu0 0
    %1348 = vmatpush2.bf16.msra.mxu0 0
    %1349 = vmatprep.subr.bf16.mxu0 0
    %1350 = vmatpush2.bf16.msra.mxu0 0
    %1351 = vmatprep.mubr.bf16.mxu0 0
    %1352 = vmatmul.mubr.bf16.gmra.mxu0 %v1115
    %v1353 = vpop.f32.mrf.mxu0
    %v1354 = vadd.f32 0.0, %v1353
    %v1355 = vpop.f32.mrf.mxu0
    %v1356 = vadd.f32 0.0, %v1355
    %v1357 = vpop.f32.mrf.mxu0
    %v1358 = vadd.f32 0.0, %v1357
    %v1359 = vpop.f32.mrf.mxu0
    %v1360 = vadd.f32 0.0, %v1359
    %1361 = vdwg.mxu0
    %v1362 = vsub.f32 0.0, %v1311
    %v1363 = vsub.f32 0.0, %v1313
    %v1364 = vsub.f32 0.0, %v1315
    %v1365 = vsub.f32 0.0, %v1317
    %v1366 = vmul.f32 %v1362, 1.442695
    %v1367 = vpow.pop %v1366
    %v1368 = vmul.f32 %v1363, 1.442695
    %v1369 = vpow.pop %v1368
    %v1370 = vmul.f32 %v1364, 1.442695
    %v1371 = vpow.pop %v1370
    %v1372 = vmul.f32 %v1365, 1.442695
    %v1373 = vpow.pop %v1372
    %v1374 = vadd.f32 %v1367, 1.0
    %v1375 = vadd.f32 %v1369, 1.0
    %v1376 = vadd.f32 %v1371, 1.0
    %v1377 = vadd.f32 %v1373, 1.0
    %v1378 = vrcp.pop %v1374
    %v1379 = vmul.f32 1.0, %v1378
    %v1380 = vrcp.pop %v1375
    %v1381 = vmul.f32 1.0, %v1380
    %v1382 = vrcp.pop %v1376
    %v1383 = vmul.f32 1.0, %v1382
    %v1384 = vrcp.pop %v1377
    %v1385 = vmul.f32 1.0, %v1384
    %v1386 = vmul.f32 %v1311, %v1379
    %v1387 = vmul.f32 %v1313, %v1381
    %v1388 = vmul.f32 %v1315, %v1383
    %v1389 = vmul.f32 %v1317, %v1385
    %v1390 = vmul.f32 %v1386, %v1354
    %v1391 = vmul.f32 %v1387, %v1356
    %v1392 = vmul.f32 %v1388, %v1358
    %v1393 = vmul.f32 %v1389, %v1360
    %s1394 = scalar_lea.vmem [#allocation7], 128
    %v1395 = vld [vmem:[%s1394] sm:$0xf]
    %v1396 = vld [vmem:[%s1394 + $0x4] sm:$0xf]
    %v1397 = vld [vmem:[%s1394 + $0x8] sm:$0xf]
    %v1398 = vld [vmem:[%s1394 + $0xc] sm:$0xf]
    %v1399 = vld [vmem:[%s1394 + $0x10] sm:$0xf]
    %v1400 = vld [vmem:[%s1394 + $0x14] sm:$0xf]
    %v1401 = vld [vmem:[%s1394 + $0x18] sm:$0xf]
    %v1402 = vld [vmem:[%s1394 + $0x1c] sm:$0xf]
    %v1403 = vld [vmem:[%s1394 + $0x20] sm:$0xf]
    %v1404 = vld [vmem:[%s1394 + $0x24] sm:$0xf]
    %v1405 = vld [vmem:[%s1394 + $0x28] sm:$0xf]
    %v1406 = vld [vmem:[%s1394 + $0x2c] sm:$0xf]
    %v1407 = vld [vmem:[%s1394 + $0x30] sm:$0xf]
    %v1408 = vld [vmem:[%s1394 + $0x34] sm:$0xf]
    %v1409 = vld [vmem:[%s1394 + $0x38] sm:$0xf]
    %v1410 = vld [vmem:[%s1394 + $0x3c] sm:$0xf]
    %v1411 = vld [vmem:[%s1394 + $0x40] sm:$0xf]
    %v1412 = vld [vmem:[%s1394 + $0x44] sm:$0xf]
    %v1413 = vld [vmem:[%s1394 + $0x48] sm:$0xf]
    %v1414 = vld [vmem:[%s1394 + $0x4c] sm:$0xf]
    %v1415 = vld [vmem:[%s1394 + $0x50] sm:$0xf]
    %v1416 = vld [vmem:[%s1394 + $0x54] sm:$0xf]
    %v1417 = vld [vmem:[%s1394 + $0x58] sm:$0xf]
    %v1418 = vld [vmem:[%s1394 + $0x5c] sm:$0xf]
    %v1419 = vld [vmem:[%s1394 + $0x60] sm:$0xf]
    %v1420 = vld [vmem:[%s1394 + $0x64] sm:$0xf]
    %v1421 = vld [vmem:[%s1394 + $0x68] sm:$0xf]
    %v1422 = vld [vmem:[%s1394 + $0x6c] sm:$0xf]
    %v1423 = vld [vmem:[%s1394 + $0x70] sm:$0xf]
    %v1424 = vld [vmem:[%s1394 + $0x74] sm:$0xf]
    %v1425 = vld [vmem:[%s1394 + $0x78] sm:$0xf]
    %v1426 = vld [vmem:[%s1394 + $0x7c] sm:$0xf]
    %v1427 = vpack.c.bf16 %v1392, %v1390
    %v1428 = vpack.c.bf16 %v1393, %v1391
    %v1461 = vunpack.c.l.b16 %v1395
    %v1462 = vunpack.c.l.b16 %v1396
    %v1463 = vunpack.c.l.b16 %v1397
    %v1464 = vunpack.c.l.b16 %v1398
    %v1465 = vunpack.c.l.b16 %v1399
    %v1466 = vunpack.c.l.b16 %v1400
    %v1467 = vunpack.c.l.b16 %v1401
    %v1468 = vunpack.c.l.b16 %v1402
    %v1469 = vunpack.c.l.b16 %v1403
    %v1470 = vunpack.c.l.b16 %v1404
    %v1471 = vunpack.c.l.b16 %v1405
    %v1472 = vunpack.c.l.b16 %v1406
    %v1473 = vunpack.c.l.b16 %v1407
    %v1474 = vunpack.c.l.b16 %v1408
    %v1475 = vunpack.c.l.b16 %v1409
    %v1476 = vunpack.c.l.b16 %v1410
    %v1477 = vunpack.c.l.b16 %v1411
    %v1478 = vunpack.c.l.b16 %v1412
    %v1479 = vunpack.c.l.b16 %v1413
    %v1480 = vunpack.c.l.b16 %v1414
    %v1481 = vunpack.c.l.b16 %v1415
    %v1482 = vunpack.c.l.b16 %v1416
    %v1483 = vunpack.c.l.b16 %v1417
    %v1484 = vunpack.c.l.b16 %v1418
    %v1485 = vunpack.c.l.b16 %v1419
    %v1486 = vunpack.c.l.b16 %v1420
    %v1487 = vunpack.c.l.b16 %v1421
    %v1488 = vunpack.c.l.b16 %v1422
    %v1489 = vunpack.c.l.b16 %v1423
    %v1490 = vunpack.c.l.b16 %v1424
    %v1491 = vunpack.c.l.b16 %v1425
    %v1492 = vunpack.c.l.b16 %v1426
    %v1493 = vpack.c.b16 %v1462, %v1461
    %v1494 = vpack.c.b16 %v1464, %v1463
    %v1495 = vpack.c.b16 %v1466, %v1465
    %v1496 = vpack.c.b16 %v1468, %v1467
    %v1497 = vpack.c.b16 %v1470, %v1469
    %v1498 = vpack.c.b16 %v1472, %v1471
    %v1499 = vpack.c.b16 %v1474, %v1473
    %v1500 = vpack.c.b16 %v1476, %v1475
    %v1501 = vpack.c.b16 %v1478, %v1477
    %v1502 = vpack.c.b16 %v1480, %v1479
    %v1503 = vpack.c.b16 %v1482, %v1481
    %v1504 = vpack.c.b16 %v1484, %v1483
    %v1505 = vpack.c.b16 %v1486, %v1485
    %v1506 = vpack.c.b16 %v1488, %v1487
    %v1507 = vpack.c.b16 %v1490, %v1489
    %v1508 = vpack.c.b16 %v1492, %v1491
    %1525 = vmatprep.subr.bf16.mxu0 0
    %1526 = vmatpush1.bf16.msra.mxu0 %v1500
    %1527 = vmatprep.subr.bf16.mxu0 0
    %1528 = vmatpush1.bf16.msra.mxu0 %v1499
    %1529 = vmatprep.subr.bf16.mxu0 0
    %1530 = vmatpush1.bf16.msra.mxu0 %v1498
    %1531 = vmatprep.subr.bf16.mxu0 0
    %1532 = vmatpush1.bf16.msra.mxu0 %v1497
    %1533 = vmatprep.subr.bf16.mxu0 0
    %1534 = vmatpush1.bf16.msra.mxu0 %v1496
    %1535 = vmatprep.subr.bf16.mxu0 0
    %1536 = vmatpush1.bf16.msra.mxu0 %v1495
    %1537 = vmatprep.subr.bf16.mxu0 0
    %1538 = vmatpush1.bf16.msra.mxu0 %v1494
    %1539 = vmatprep.subr.bf16.mxu0 0
    %1540 = vmatpush1.bf16.msra.mxu0 %v1493
    %1541 = vmatprep.subr.bf16.mxu0 0
    %1542 = vmatpush2.bf16.msra.mxu0 %v1508
    %1543 = vmatprep.subr.bf16.mxu0 0
    %1544 = vmatpush2.bf16.msra.mxu0 %v1507
    %1545 = vmatprep.subr.bf16.mxu0 0
    %1546 = vmatpush2.bf16.msra.mxu0 %v1506
    %1547 = vmatprep.subr.bf16.mxu0 0
    %1548 = vmatpush2.bf16.msra.mxu0 %v1505
    %1549 = vmatprep.subr.bf16.mxu0 0
    %1550 = vmatpush2.bf16.msra.mxu0 %v1504
    %1551 = vmatprep.subr.bf16.mxu0 0
    %1552 = vmatpush2.bf16.msra.mxu0 %v1503
    %1553 = vmatprep.subr.bf16.mxu0 0
    %1554 = vmatpush2.bf16.msra.mxu0 %v1502
    %1555 = vmatprep.subr.bf16.mxu0 0
    %1556 = vmatpush2.bf16.msra.mxu0 %v1501
    %1557 = vmatprep.mubr.bf16.mxu0 %v1428
    %1558 = vmatmul.mubr.bf16.gmra.mxu0 %v1427
    %v1559 = vpop.f32.mrf.mxu0
    %v1560 = vadd.f32 0.0, %v1559
    %v1561 = vpop.f32.mrf.mxu0
    %v1562 = vpop.f32.mrf.mxu0
    %v1563 = vadd.f32 0.0, %v1562
    %v1564 = vpop.f32.mrf.mxu0
    %1565 = vdwg.mxu0
    %v1566 = vadd.f32 %v1060, %v1560
    %v1567 = vadd.f32 %v1061, %v1563
    %v1568 = vmul.f32 %v1566, %v1566
    %v1569 = vmul.f32 %v1567, %v1567
    %1570 = vadd.xlane.f32.xlu0 %v1568
    %v1571 = vpop.xlane.xlu0 %1570
    %1572 = vadd.xlane.f32.xlu0 %v1569
    %v1573 = vpop.xlane.xlu0 %1572
    %v1574 = vmul.f32 %v1571, %v294
    %v1575 = vmul.f32 %v1573, %v294
    %v1576 = vadd.f32 %v1574, 1e-06
    %v1577 = vadd.f32 %v1575, 1e-06
    %v1578 = vrsqrt.pop %v1576
    %v1579 = vrsqrt.pop %v1577
    %v1580 = vmul.f32 %v1566, %v1578
    %v1581 = vmul.f32 %v1567, %v1579
    %v1582 = vlaneseq
    %v1583 = vshrl.u32 %v1582, 7
    %v1584 = vsub.s32 1, %v1583
    %v1585 = vrot.slane %v95, %v1584
    %v1586 = vmul.f32 %v1580, %v1585
    %v1587 = vmul.f32 %v1581, %v1585
    %v1588 = vld [vmem:[#allocation9] sm:$0xf]
    %v1589 = vld [vmem:[#allocation9 + $0x4] sm:$0xf]
    %v1590 = vld [vmem:[#allocation9 + $0x8] sm:$0xf]
    %v1591 = vld [vmem:[#allocation9 + $0xc] sm:$0xf]
    %v1592 = vld [vmem:[#allocation9 + $0x10] sm:$0xf]
    %v1593 = vld [vmem:[#allocation9 + $0x14] sm:$0xf]
    %v1594 = vld [vmem:[#allocation9 + $0x18] sm:$0xf]
    %v1595 = vld [vmem:[#allocation9 + $0x1c] sm:$0xf]
    %v1596 = vld [vmem:[#allocation9 + $0x20] sm:$0xf]
    %v1597 = vld [vmem:[#allocation9 + $0x24] sm:$0xf]
    %v1598 = vld [vmem:[#allocation9 + $0x28] sm:$0xf]
    %v1599 = vld [vmem:[#allocation9 + $0x2c] sm:$0xf]
    %v1600 = vld [vmem:[#allocation9 + $0x30] sm:$0xf]
    %v1601 = vld [vmem:[#allocation9 + $0x34] sm:$0xf]
    %v1602 = vld [vmem:[#allocation9 + $0x38] sm:$0xf]
    %v1603 = vld [vmem:[#allocation9 + $0x3c] sm:$0xf]
    %v1604 = vpack.c.bf16 %v1587, %v1586
    %v1605 = vlaneseq
    %v1606 = vshrl.u32 %v1605, 7
    %v1607 = vsub.s32 2, %v1606
    %v1608 = vrot.slane %v95, %v1607
    %v1625 = vunpack.c.l.b16 %v1588
    %v1626 = vunpack.c.l.b16 %v1589
    %v1627 = vunpack.c.l.b16 %v1590
    %v1628 = vunpack.c.l.b16 %v1591
    %v1629 = vunpack.c.l.b16 %v1592
    %v1630 = vunpack.c.l.b16 %v1593
    %v1631 = vunpack.c.l.b16 %v1594
    %v1632 = vunpack.c.l.b16 %v1595
    %v1633 = vunpack.c.l.b16 %v1596
    %v1634 = vunpack.c.l.b16 %v1597
    %v1635 = vunpack.c.l.b16 %v1598
    %v1636 = vunpack.c.l.b16 %v1599
    %v1637 = vunpack.c.l.b16 %v1600
    %v1638 = vunpack.c.l.b16 %v1601
    %v1639 = vunpack.c.l.b16 %v1602
    %v1640 = vunpack.c.l.b16 %v1603
    %v1641 = vpack.c.b16 %v1626, %v1625
    %v1642 = vpack.c.b16 %v1628, %v1627
    %v1643 = vpack.c.b16 %v1630, %v1629
    %v1644 = vpack.c.b16 %v1632, %v1631
    %v1645 = vpack.c.b16 %v1634, %v1633
    %v1646 = vpack.c.b16 %v1636, %v1635
    %v1647 = vpack.c.b16 %v1638, %v1637
    %v1648 = vpack.c.b16 %v1640, %v1639
    %1657 = vmatprep.subr.bf16.mxu0 0
    %1658 = vmatpush1.bf16.msra.mxu0 %v1648
    %1659 = vmatprep.subr.bf16.mxu0 0
    %1660 = vmatpush1.bf16.msra.mxu0 %v1647
    %1661 = vmatprep.subr.bf16.mxu0 0
    %1662 = vmatpush1.bf16.msra.mxu0 %v1646
    %1663 = vmatprep.subr.bf16.mxu0 0
    %1664 = vmatpush1.bf16.msra.mxu0 %v1645
    %1665 = vmatprep.subr.bf16.mxu0 0
    %1666 = vmatpush1.bf16.msra.mxu0 %v1644
    %1667 = vmatprep.subr.bf16.mxu0 0
    %1668 = vmatpush1.bf16.msra.mxu0 %v1643
    %1669 = vmatprep.subr.bf16.mxu0 0
    %1670 = vmatpush1.bf16.msra.mxu0 %v1642
    %1671 = vmatprep.subr.bf16.mxu0 0
    %1672 = vmatpush1.bf16.msra.mxu0 %v1641
    %1673 = vmatprep.subr.bf16.mxu0 0
    %1674 = vmatpush2.bf16.msra.mxu0 0
    %1675 = vmatprep.subr.bf16.mxu0 0
    %1676 = vmatpush2.bf16.msra.mxu0 0
    %1677 = vmatprep.subr.bf16.mxu0 0
    %1678 = vmatpush2.bf16.msra.mxu0 0
    %1679 = vmatprep.subr.bf16.mxu0 0
    %1680 = vmatpush2.bf16.msra.mxu0 0
    %1681 = vmatprep.subr.bf16.mxu0 0
    %1682 = vmatpush2.bf16.msra.mxu0 0
    %1683 = vmatprep.subr.bf16.mxu0 0
    %1684 = vmatpush2.bf16.msra.mxu0 0
    %1685 = vmatprep.subr.bf16.mxu0 0
    %1686 = vmatpush2.bf16.msra.mxu0 0
    %1687 = vmatprep.subr.bf16.mxu0 0
    %1688 = vmatpush2.bf16.msra.mxu0 0
    %1689 = vmatprep.mubr.bf16.mxu0 0
    %1690 = vmatmul.mubr.bf16.gmra.mxu0 %v1604
    %v1691 = vpop.f32.mrf.mxu0
    %v1692 = vadd.f32 %v1608, %v1691
    %v1693 = vpop.f32.mrf.mxu0
    %v1694 = vpop.f32.mrf.mxu0
    %v1695 = vadd.f32 %v1608, %v1694
    %v1696 = vpop.f32.mrf.mxu0
    %1697 = vdwg.mxu0
    %vm1698 = vcmp.gt.f32.partialorder %v1692, 0.0
    %vm1699 = vcmp.gt.f32.partialorder %v1695, 0.0
    %v1700 = vmul.f32 %v1692, 0.01
    %v1701 = vmul.f32 %v1695, 0.01
    %v1702 = vsel %vm1698, %v1692, %v1700
    %v1703 = vsel %vm1699, %v1695, %v1701
    %v1704 = vlaneseq
    %v1705 = vshrl.u32 %v1704, 7
    %v1706 = vsub.s32 3, %v1705
    %v1707 = vrot.slane %v95, %v1706
    %v1708 = vmul.f32 %v1702, %v1707
    %v1709 = vmul.f32 %v1703, %v1707
    %1710 = vadd.xlane.f32.xlu0 %v1708
    %v1711 = vpop.xlane.xlu0 %1710
    %1712 = vadd.xlane.f32.xlu0 %v1709
    %v1713 = vpop.xlane.xlu0 %1712
    %v1714 = vlaneseq
    %v1715 = vshrl.u32 %v1714, 7
    %v1716 = vsub.s32 4, %v1715
    %v1717 = vrot.slane %v95, %v1716
    %v1718 = vadd.f32 %v1711, %v1717
    %v1719 = vadd.f32 %v1713, %v1717
    %v1720 = vsub.f32 0.0, %v1718
    %v1721 = vsub.f32 0.0, %v1719
    %v1722 = vmul.f32 %v1720, 1.442695
    %v1723 = vpow.pop %v1722
    %v1724 = vmul.f32 %v1721, 1.442695
    %v1725 = vpow.pop %v1724
    %v1726 = vadd.f32 %v1723, 1.0
    %v1727 = vadd.f32 %v1725, 1.0
    %v1728 = vrcp.pop %v1726
    %v1729 = vrcp.pop %v1727
    %v1730 = vmul.f32 %v1728, 20.0
    %v1731 = vmul.f32 %v1729, 20.0
    %1733 = vset.pattern.permute.xlu0 0
    %1734 = vperm.xlu0 %1733, %v1730
    %v1735 = vpop.permute.xlu0 %1734
    %1738 = vset.pattern.permute.xlu0 0
    %1739 = vperm.xlu0 %1738, %v1731
    %v1740 = vpop.permute.xlu0 %1739
    %vm1742 = vcmask 64512
    %1743 = vst.msk [vmem:[%s7] sm:$0xff] %vm1742, %v1735
    %1744 = vst.msk [vmem:[%s7 + $0x8] sm:$0xff] %vm1742, %v1740
    // Predicated region
    $region50: #{bwe_forward.1} parent=1 // pred_check
      _
    $region51: #{bwe_forward.1} parent=1 // pred_check_branch
      %1746 = sbr.rel (0) target = $region53
    $region52: #{bwe_forward.1} parent=1 // pred_region
      _
    $region53: #{bwe_forward.1} parent=1 // pred_fallthru
      _
    // Predicated region
    $region54: #{bwe_forward.1} parent=1 // pred_check
      _
    $region55: #{bwe_forward.1} parent=1 // pred_check_branch
      %1748 = sbr.rel (0) target = $region57
    $region56: #{bwe_forward.1} parent=1 // pred_region
      _
    $region57: #{bwe_forward.1} parent=1 // pred_fallthru
      _
    %1749 = vsyncpa [#allocation3], 1
    %1750 = vsyncpa [#allocation5], 1
    %1751 = vsyncpa [#allocation8], 1

</llo_original>
